<compile_context>
chip_gen: v6e
topology: v6e:2x2x1
jax: 0.10.0
libtpu: 0.0.40
codegen_flags: <defaults>
</compile_context>

<pallas_src>
import jax
import jax.numpy as jnp
from jax import lax
from jax.experimental import pallas as pl
from jax.experimental.pallas import tpu as pltpu

# --- small-BERT config -------------------------------------------------------
B, S, H = 2, 8, 32          # batch, seq, hidden
NH = 4                      # attention heads
HD = H // NH                # head dim
INTER = 64                  # FFN intermediate size
L = 2                       # number of encoder layers
VOCAB, TYPE_VOCAB, MAX_POS = 50, 2, 16
EPS = 1e-12                 # BERT LayerNorm eps
NVEC = 8                    # packed per-layer vectors: bqkv, bo, g1, b1, bi, bd, g2, b2
VW = 3 * H                  # packed-vector row width (>= 3*H and >= INTER)

BB = 1                      # sequences per grid step ("parallel" batch axis for v7x megacore)
assert B % BB == 0
assert BB == 1              # BB > 1 would need the batched (rank-3) attention path


# --- in-kernel helpers -------------------------------------------------------
def _layer_norm(x, g, b):
    mu = jnp.mean(x, axis=-1, keepdims=True)
    var = jnp.mean(jnp.square(x - mu), axis=-1, keepdims=True)
    return (x - mu) * lax.rsqrt(var + EPS) * g + b


def _gelu_tanh(x):
    # TODO(synk): HF BERT default act is exact (erf) GELU; tanh approximation used here.
    c = 0.7978845608028654  # sqrt(2/pi)
    return 0.5 * x * (1.0 + jnp.tanh(c * (x + 0.044715 * x * x * x)))


# --- fused Pallas kernel (grid = (batch blocks, layers)) ----------------------
def fused_bert_kernel(x_ref, mask_ref, eln_ref,
                      wqkv_ref, wo_ref, wi_ref, wd_ref, vec_ref,
                      out_ref, x_scr):
    # x_ref   : [BB*S, H]      f32 summed embeddings for this batch block
    # mask_ref: [BB, 1, S]     f32 additive attention mask
    # eln_ref : [2, H]         f32 embedding LayerNorm gamma/beta
    # wqkv_ref: [1, H, 3H] bf16   wo_ref: [1, H, H] bf16   (current layer's slab)
    # wi_ref  : [1, H, INTER] bf16   wd_ref: [1, INTER, H] bf16
    # vec_ref : [1, NVEC, VW]  f32 packed biases / LayerNorm params for this layer
    # out_ref : [BB, L, H]     f32 CLS rows (resident across the layer axis)
    # x_scr   : [BB*S, H]      f32 VMEM scratch carrying the residual stream across layers
    l = pl.program_id(1)

    # Embedding LayerNorm once per batch block; residual stream lives in VMEM scratch.
    @pl.when(l == 0)
    def _init():
        x_scr[...] = _layer_norm(x_ref[...], eln_ref[0:1, :], eln_ref[1:2, :])

    x = x_scr[...]                          # [BB*S, H] f32 residual stream
    mask = mask_ref[0]                      # [1, S] additive mask (per key position)

    bqkv = vec_ref[0, 0:1, :]               # (1, 3H)
    bo   = vec_ref[0, 1:2, :H]
    g1   = vec_ref[0, 2:3, :H]
    b1   = vec_ref[0, 3:4, :H]
    bi   = vec_ref[0, 4:5, :INTER]
    bd   = vec_ref[0, 5:6, :H]
    g2   = vec_ref[0, 6:7, :H]
    b2   = vec_ref[0, 7:8, :H]

    # Fused QKV projection: bf16 operands, f32 accumulation on the MXU.
    qkv = jnp.dot(x.astype(jnp.bfloat16), wqkv_ref[0],
                  preferred_element_type=jnp.float32) + bqkv          # [BB*S, 3H] f32

    # Multi-head attention. BB == 1, so every per-head matmul is a plain 2-D MXU op.
    # The concat-of-heads is folded into the output projection: each head's context is
    # multiplied by the matching HD-row slice of Wo and accumulated — no lane concat of
    # 8-lane pieces is ever materialized.
    scale = 1.0 / (HD ** 0.5)
    attn = jnp.zeros((BB * S, H), jnp.float32)
    for h in range(NH):                                               # static, NH = 4
        qh = qkv[:, h * HD:(h + 1) * HD].astype(jnp.bfloat16)
        kh = qkv[:, H + h * HD:H + (h + 1) * HD].astype(jnp.bfloat16)
        vh = qkv[:, 2 * H + h * HD:2 * H + (h + 1) * HD].astype(jnp.bfloat16)
        # scores = q @ k^T without materializing a transpose (contract last with last).
        s = lax.dot_general(qh, kh, (((1,), (1,)), ((), ())),
                            preferred_element_type=jnp.float32) * scale + mask
        s = s - jnp.max(s, axis=-1, keepdims=True)
        p = jnp.exp(s)
        p = p * pl.reciprocal(jnp.sum(p, axis=-1, keepdims=True), approx=True)
        ctx_h = jnp.dot(p.astype(jnp.bfloat16), vh,
                        preferred_element_type=jnp.float32)           # [BB*S, HD]
        attn = attn + jnp.dot(ctx_h.astype(jnp.bfloat16),
                              wo_ref[0, h * HD:(h + 1) * HD, :],
                              preferred_element_type=jnp.float32)
    attn = attn + bo

    # Residual + LayerNorm, GELU MLP, residual + LayerNorm (f32 math — v5e-safe).
    h1 = _layer_norm(attn + x, g1, b1)
    inter = _gelu_tanh(jnp.dot(h1.astype(jnp.bfloat16), wi_ref[0],
                               preferred_element_type=jnp.float32) + bi)
    ffn = jnp.dot(inter.astype(jnp.bfloat16), wd_ref[0],
                  preferred_element_type=jnp.float32) + bd
    x_new = _layer_norm(ffn + h1, g2, b2)                             # [BB*S, H]

    x_scr[...] = x_new                                                # carry to next layer

    # CLS row of each sequence in the block written directly into the layer-l sublane
    # slot of the resident output block (no reshape + strided slice of the activation).
    for i in range(BB):                                               # static (BB = 1)
        out_ref[pl.ds(i, 1), pl.ds(l, 1), :] = x_new[i * S:i * S + 1, :].reshape(1, 1, H)


# --- wrapper -----------------------------------------------------------------
def bert_layers_wise(input_ids, token_type_ids, attention_mask, emb, stacked):
    # Embedding gathers are plain-JAX glue.
    # TODO(synk): could move in-kernel via PrefetchScalarGridSpec + pl.Element row gathers.
    e = (emb["word"][input_ids]
         + emb["pos"][:S][None, :, :]
         + emb["type"][token_type_ids])                               # [B, S, H]
    x2d = e.reshape(B * S, H).astype(jnp.float32)
    mask_add = ((1.0 - attention_mask.astype(jnp.float32)) * -1e9).reshape(B, 1, S)
    eln = jnp.stack([emb["ln_g"], emb["ln_b"]], axis=0)               # [2, H]

    nb = B // BB
    grid_spec = pltpu.PrefetchScalarGridSpec(
        num_scalar_prefetch=0,
        grid=(nb, L),                              # batch blocks (parallel) x layers (carried)
        in_specs=[
            pl.BlockSpec((BB * S, H), lambda b, l: (b, 0)),           # activations (per block)
            pl.BlockSpec((BB, 1, S), lambda b, l: (b, 0, 0)),         # additive mask
            pl.BlockSpec((2, H), lambda b, l: (0, 0)),                # embedding LN params
            pl.BlockSpec((1, H, 3 * H), lambda b, l: (l, 0, 0)),      # streamed per-layer weights
            pl.BlockSpec((1, H, H), lambda b, l: (l, 0, 0)),
            pl.BlockSpec((1, H, INTER), lambda b, l: (l, 0, 0)),
            pl.BlockSpec((1, INTER, H), lambda b, l: (l, 0, 0)),
            pl.BlockSpec((1, NVEC, VW), lambda b, l: (l, 0, 0)),      # packed bias/LN vectors
        ],
        out_specs=pl.BlockSpec((BB, L, H), lambda b, l: (b, 0, 0)),   # resident across layers
        scratch_shapes=[pltpu.VMEM((BB * S, H), jnp.float32)],        # carried residual stream
    )
    cls = pl.pallas_call(
        fused_bert_kernel,
        out_shape=jax.ShapeDtypeStruct((B, L, H), jnp.float32),
        grid_spec=grid_spec,
        compiler_params=pltpu.CompilerParams(
            dimension_semantics=("parallel", "arbitrary"),
            vmem_limit_bytes=32 * 1024 * 1024,
        ),
    )(x2d, mask_add, eln,
      stacked["wqkv"], stacked["wo"], stacked["wi"], stacked["wd"], stacked["vec"])

    # [B, L, H] -> [B, L*H] is a contiguous (free) reshape and already matches
    # torch.cat([h[:, 0, :] for h in hidden_states[1:]], dim=1).
    return cls.reshape(B, L * H)


# --- deterministic synthetic weights ----------------------------------------
def init_params(key):
    def normal(k, shape, scale=0.02):
        return (scale * jax.random.normal(k, shape)).astype(jnp.float32)

    keys = jax.random.split(key, 4 + L)
    emb = {
        "word": normal(keys[0], (VOCAB, H)),
        "pos": normal(keys[1], (MAX_POS, H)),
        "type": normal(keys[2], (TYPE_VOCAB, H)),
        "ln_g": jnp.ones((H,), jnp.float32),
        "ln_b": jnp.zeros((H,), jnp.float32),
    }

    def pad_row(v):
        v = v.astype(jnp.float32)
        return jnp.pad(v, (0, VW - v.shape[0]))

    wqkv_l, wo_l, wi_l, wd_l, vec_l = [], [], [], [], []
    for l in range(L):
        ks = jax.random.split(keys[4 + l], 6)
        wq, wk, wv = normal(ks[0], (H, H)), normal(ks[1], (H, H)), normal(ks[2], (H, H))
        wqkv_l.append(jnp.concatenate([wq, wk, wv], axis=1))          # [H, 3H]
        wo_l.append(normal(ks[3], (H, H)))
        wi_l.append(normal(ks[4], (H, INTER)))
        wd_l.append(normal(ks[5], (INTER, H)))
        vec_l.append(jnp.stack([
            jnp.zeros((VW,), jnp.float32),     # bqkv
            pad_row(jnp.zeros((H,))),          # bo
            pad_row(jnp.ones((H,))),           # LN1 gamma
            pad_row(jnp.zeros((H,))),          # LN1 beta
            pad_row(jnp.zeros((INTER,))),      # bi
            pad_row(jnp.zeros((H,))),          # bd
            pad_row(jnp.ones((H,))),           # LN2 gamma
            pad_row(jnp.zeros((H,))),          # LN2 beta
        ], axis=0))                            # [NVEC, VW]

    stacked = {
        "wqkv": jnp.stack(wqkv_l).astype(jnp.bfloat16),   # [L, H, 3H]
        "wo":   jnp.stack(wo_l).astype(jnp.bfloat16),     # [L, H, H]
        "wi":   jnp.stack(wi_l).astype(jnp.bfloat16),     # [L, H, INTER]
        "wd":   jnp.stack(wd_l).astype(jnp.bfloat16),     # [L, INTER, H]
        "vec":  jnp.stack(vec_l),                         # [L, NVEC, VW] f32
    }
    return emb, stacked


if __name__ == "__main__":
    key = jax.random.PRNGKey(0)
    k_param, k_ids = jax.random.split(key)
    emb, stacked = init_params(k_param)

    input_ids = jax.random.randint(k_ids, (B, S), 0, VOCAB, dtype=jnp.int32)
    token_type_ids = jnp.zeros((B, S), jnp.int32)
    attention_mask = jnp.ones((B, S), jnp.float32).at[1, 6:].set(0.0)

    fwd = jax.jit(bert_layers_wise)
    out = fwd(input_ids, token_type_ids, attention_mask, emb, stacked)
    out = jax.block_until_ready(out)
    assert out.shape == (B, L * H), out.shape
    print("KERNEL_OK")
</pallas_src>

<mosaic_0001>
module attributes {stable_mosaic.version = 11 : i64} {
  func.func @fused_bert_kernel(%arg0: i32, %arg1: i32, %arg2: memref<8x32xf32, #tpu.memory_space<vmem>>, %arg3: memref<1x1x8xf32, #tpu.memory_space<vmem>>, %arg4: memref<2x32xf32, #tpu.memory_space<vmem>>, %arg5: memref<1x32x96xbf16, #tpu.memory_space<vmem>>, %arg6: memref<1x32x32xbf16, #tpu.memory_space<vmem>>, %arg7: memref<1x32x64xbf16, #tpu.memory_space<vmem>>, %arg8: memref<1x64x32xbf16, #tpu.memory_space<vmem>>, %arg9: memref<1x8x96xf32, #tpu.memory_space<vmem>>, %arg10: memref<1x2x32xf32, #tpu.memory_space<vmem>>, %arg11: memref<8x32xf32, #tpu.memory_space<vmem>>) attributes {dimension_semantics = [#tpu.dimension_semantics<parallel>, #tpu.dimension_semantics<arbitrary>], iteration_bounds = array<i64: 2, 2>, scalar_prefetch = 0 : i64, scratch_operands = 1 : i64, tpu.core_type = #tpu.core_type<tc>, window_params = [{transform_indices = @transform_0, window_bounds = array<i64: 8, 32>}, {transform_indices = @transform_1, window_bounds = array<i64: 1, 1, 8>}, {pipeline_mode = #tpu.pipeline_mode<synchronous>, transform_indices = @transform_2, window_bounds = array<i64: 2, 32>}, {transform_indices = @transform_3, window_bounds = array<i64: 1, 32, 96>}, {transform_indices = @transform_4, window_bounds = array<i64: 1, 32, 32>}, {transform_indices = @transform_5, window_bounds = array<i64: 1, 32, 64>}, {transform_indices = @transform_6, window_bounds = array<i64: 1, 64, 32>}, {transform_indices = @transform_7, window_bounds = array<i64: 1, 8, 96>}, {transform_indices = @transform_8, window_bounds = array<i64: 1, 2, 32>}]} {
    %c0_i32 = arith.constant 0 : i32
    %0 = arith.cmpi eq, %arg1, %c0_i32 : i32
    %1 = arith.extui %0 : i1 to i32
    %c0_i32_0 = arith.constant 0 : i32
    %2 = arith.cmpi ne, %1, %c0_i32_0 : i32
    scf.if %2 {
      %c0_85 = arith.constant 0 : index
      %c0_86 = arith.constant 0 : index
      %219 = vector.load %arg2[%c0_85, %c0_86] : memref<8x32xf32, #tpu.memory_space<vmem>>, vector<8x32xf32>
      %c0_87 = arith.constant 0 : index
      %c0_88 = arith.constant 0 : index
      %220 = vector.load %arg4[%c0_87, %c0_88] : memref<2x32xf32, #tpu.memory_space<vmem>>, vector<1x32xf32>
      %c1_89 = arith.constant 1 : index
      %c0_90 = arith.constant 0 : index
      %221 = vector.load %arg4[%c1_89, %c0_90] : memref<2x32xf32, #tpu.memory_space<vmem>>, vector<1x32xf32>
      %cst_91 = arith.constant dense<0.000000e+00> : vector<8xf32>
      %222 = vector.multi_reduction <add>, %219, %cst_91 [1] : vector<8x32xf32> to vector<8xf32>
      %223 = vector.shape_cast %222 : vector<8xf32> to vector<8x1xf32>
      %cst_92 = arith.constant 3.200000e+01 : f32
      %224 = vector.broadcast %cst_92 : f32 to vector<8x1xf32>
      %225 = arith.divf %223, %224 : vector<8x1xf32>
      %226 = vector.broadcast %225 : vector<8x1xf32> to vector<8x32xf32>
      %227 = arith.subf %219, %226 : vector<8x32xf32>
      %228 = arith.mulf %227, %227 : vector<8x32xf32>
      %cst_93 = arith.constant dense<0.000000e+00> : vector<8xf32>
      %229 = vector.multi_reduction <add>, %228, %cst_93 [1] : vector<8x32xf32> to vector<8xf32>
      %230 = vector.shape_cast %229 : vector<8xf32> to vector<8x1xf32>
      %cst_94 = arith.constant 3.200000e+01 : f32
      %231 = vector.broadcast %cst_94 : f32 to vector<8x1xf32>
      %232 = arith.divf %230, %231 : vector<8x1xf32>
      %233 = vector.broadcast %225 : vector<8x1xf32> to vector<8x32xf32>
      %234 = arith.subf %219, %233 : vector<8x32xf32>
      %cst_95 = arith.constant 9.99999996E-13 : f32
      %235 = vector.broadcast %cst_95 : f32 to vector<8x1xf32>
      %236 = arith.addf %232, %235 : vector<8x1xf32>
      %237 = math.rsqrt %236 : vector<8x1xf32>
      %238 = vector.broadcast %237 : vector<8x1xf32> to vector<8x32xf32>
      %239 = arith.mulf %234, %238 : vector<8x32xf32>
      %240 = vector.broadcast %220 : vector<1x32xf32> to vector<8x32xf32>
      %241 = arith.mulf %239, %240 : vector<8x32xf32>
      %242 = vector.broadcast %221 : vector<1x32xf32> to vector<8x32xf32>
      %243 = arith.addf %241, %242 : vector<8x32xf32>
      %c0_96 = arith.constant 0 : index
      %c0_97 = arith.constant 0 : index
      %244 = vector.load %arg11[%c0_96, %c0_97] : memref<8x32xf32, #tpu.memory_space<vmem>>, vector<8x32xf32>
      tpu.vector_store %arg11[%c0_96, %c0_97], %243 {strides = array<i32>} : memref<8x32xf32, #tpu.memory_space<vmem>>, vector<8x32xf32>,
    } else {
    }
    %c0 = arith.constant 0 : index
    %c0_1 = arith.constant 0 : index
    %3 = vector.load %arg11[%c0, %c0_1] : memref<8x32xf32, #tpu.memory_space<vmem>>, vector<8x32xf32>
    %c0_2 = arith.constant 0 : index
    %c0_3 = arith.constant 0 : index
    %c0_4 = arith.constant 0 : index
    %4 = vector.load %arg3[%c0_2, %c0_3, %c0_4] : memref<1x1x8xf32, #tpu.memory_space<vmem>>, vector<1x1x8xf32>
    %5 = vector.shape_cast %4 : vector<1x1x8xf32> to vector<1x8xf32>
    %c0_5 = arith.constant 0 : index
    %c0_6 = arith.constant 0 : index
    %c0_7 = arith.constant 0 : index
    %6 = vector.load %arg9[%c0_5, %c0_6, %c0_7] : memref<1x8x96xf32, #tpu.memory_space<vmem>>, vector<1x1x96xf32>
    %7 = vector.shape_cast %6 : vector<1x1x96xf32> to vector<1x96xf32>
    %c0_8 = arith.constant 0 : index
    %c1 = arith.constant 1 : index
    %c0_9 = arith.constant 0 : index
    %8 = vector.load %arg9[%c0_8, %c1, %c0_9] : memref<1x8x96xf32, #tpu.memory_space<vmem>>, vector<1x1x32xf32>
    %9 = vector.shape_cast %8 : vector<1x1x32xf32> to vector<1x32xf32>
    %c0_10 = arith.constant 0 : index
    %c2 = arith.constant 2 : index
    %c0_11 = arith.constant 0 : index
    %10 = vector.load %arg9[%c0_10, %c2, %c0_11] : memref<1x8x96xf32, #tpu.memory_space<vmem>>, vector<1x1x32xf32>
    %11 = vector.shape_cast %10 : vector<1x1x32xf32> to vector<1x32xf32>
    %c0_12 = arith.constant 0 : index
    %c3 = arith.constant 3 : index
    %c0_13 = arith.constant 0 : index
    %12 = vector.load %arg9[%c0_12, %c3, %c0_13] : memref<1x8x96xf32, #tpu.memory_space<vmem>>, vector<1x1x32xf32>
    %13 = vector.shape_cast %12 : vector<1x1x32xf32> to vector<1x32xf32>
    %c0_14 = arith.constant 0 : index
    %c4 = arith.constant 4 : index
    %c0_15 = arith.constant 0 : index
    %14 = vector.load %arg9[%c0_14, %c4, %c0_15] : memref<1x8x96xf32, #tpu.memory_space<vmem>>, vector<1x1x64xf32>
    %15 = vector.shape_cast %14 : vector<1x1x64xf32> to vector<1x64xf32>
    %c0_16 = arith.constant 0 : index
    %c5 = arith.constant 5 : index
    %c0_17 = arith.constant 0 : index
    %16 = vector.load %arg9[%c0_16, %c5, %c0_17] : memref<1x8x96xf32, #tpu.memory_space<vmem>>, vector<1x1x32xf32>
    %17 = vector.shape_cast %16 : vector<1x1x32xf32> to vector<1x32xf32>
    %c0_18 = arith.constant 0 : index
    %c6 = arith.constant 6 : index
    %c0_19 = arith.constant 0 : index
    %18 = vector.load %arg9[%c0_18, %c6, %c0_19] : memref<1x8x96xf32, #tpu.memory_space<vmem>>, vector<1x1x32xf32>
    %19 = vector.shape_cast %18 : vector<1x1x32xf32> to vector<1x32xf32>
    %c0_20 = arith.constant 0 : index
    %c7 = arith.constant 7 : index
    %c0_21 = arith.constant 0 : index
    %20 = vector.load %arg9[%c0_20, %c7, %c0_21] : memref<1x8x96xf32, #tpu.memory_space<vmem>>, vector<1x1x32xf32>
    %21 = vector.shape_cast %20 : vector<1x1x32xf32> to vector<1x32xf32>
    %22 = arith.truncf %3 : vector<8x32xf32> to vector<8x32xbf16>
    %c0_22 = arith.constant 0 : index
    %c0_23 = arith.constant 0 : index
    %c0_24 = arith.constant 0 : index
    %23 = vector.load %arg5[%c0_22, %c0_23, %c0_24] : memref<1x32x96xbf16, #tpu.memory_space<vmem>>, vector<1x32x96xbf16>
    %24 = vector.shape_cast %23 : vector<1x32x96xbf16> to vector<32x96xbf16>
    %cst = arith.constant dense<0.000000e+00> : vector<8x96xf32>
    %25 = tpu.matmul %22, %24, %cst {dimension_numbers = #tpu.dot_dimension_numbers<[1], [0], [0], [1], [0, 0, 1, 1], [], []>} : vector<8x32xbf16>, vector<32x96xbf16>, vector<8x96xf32> -> vector<8x96xf32>
    %26 = vector.broadcast %7 : vector<1x96xf32> to vector<8x96xf32>
    %27 = arith.addf %25, %26 : vector<8x96xf32>
    %cst_25 = arith.constant 0.000000e+00 : f32
    %28 = vector.broadcast %cst_25 : f32 to vector<8x32xf32>
    %29 = vector.extract_strided_slice %27 {offsets = [0, 0], sizes = [8, 8], strides = [1, 1]} : vector<8x96xf32> to vector<8x8xf32>
    %30 = arith.truncf %29 : vector<8x8xf32> to vector<8x8xbf16>
    %31 = vector.extract_strided_slice %27 {offsets = [0, 32], sizes = [8, 8], strides = [1, 1]} : vector<8x96xf32> to vector<8x8xf32>
    %32 = arith.truncf %31 : vector<8x8xf32> to vector<8x8xbf16>
    %33 = vector.extract_strided_slice %27 {offsets = [0, 64], sizes = [8, 8], strides = [1, 1]} : vector<8x96xf32> to vector<8x8xf32>
    %34 = arith.truncf %33 : vector<8x8xf32> to vector<8x8xbf16>
    %cst_26 = arith.constant dense<0.000000e+00> : vector<8x8xf32>
    %35 = tpu.matmul %30, %32, %cst_26 {dimension_numbers = #tpu.dot_dimension_numbers<[1], [1], [0], [0], [0, 0, 1, 0], [], []>} : vector<8x8xbf16>, vector<8x8xbf16>, vector<8x8xf32> -> vector<8x8xf32>
    %cst_27 = arith.constant 0.353553385 : f32
    %36 = vector.broadcast %cst_27 : f32 to vector<8x8xf32>
    %37 = arith.mulf %35, %36 : vector<8x8xf32>
    %38 = vector.broadcast %5 : vector<1x8xf32> to vector<8x8xf32>
    %39 = arith.addf %37, %38 : vector<8x8xf32>
    %cst_28 = arith.constant dense<0xFF800000> : vector<8xf32>
    %40 = vector.multi_reduction <maximumf>, %39, %cst_28 [1] : vector<8x8xf32> to vector<8xf32>
    %41 = vector.shape_cast %40 : vector<8xf32> to vector<8x1xf32>
    %42 = vector.broadcast %41 : vector<8x1xf32> to vector<8x8xf32>
    %43 = arith.subf %39, %42 : vector<8x8xf32>
    %44 = math.exp %43 : vector<8x8xf32>
    %cst_29 = arith.constant dense<0.000000e+00> : vector<8xf32>
    %45 = vector.multi_reduction <add>, %44, %cst_29 [1] : vector<8x8xf32> to vector<8xf32>
    %46 = vector.shape_cast %45 : vector<8xf32> to vector<8x1xf32>
    %47 = tpu.reciprocal %46 {approx = true} : vector<8x1xf32> -> vector<8x1xf32>
    %48 = vector.broadcast %47 : vector<8x1xf32> to vector<8x8xf32>
    %49 = arith.mulf %44, %48 : vector<8x8xf32>
    %50 = arith.truncf %49 : vector<8x8xf32> to vector<8x8xbf16>
    %cst_30 = arith.constant dense<0.000000e+00> : vector<8x8xf32>
    %51 = tpu.matmul %50, %34, %cst_30 {dimension_numbers = #tpu.dot_dimension_numbers<[1], [0], [0], [1], [0, 0, 1, 1], [], []>} : vector<8x8xbf16>, vector<8x8xbf16>, vector<8x8xf32> -> vector<8x8xf32>
    %52 = arith.truncf %51 : vector<8x8xf32> to vector<8x8xbf16>
    %c0_31 = arith.constant 0 : index
    %c0_32 = arith.constant 0 : index
    %c0_33 = arith.constant 0 : index
    %53 = vector.load %arg6[%c0_31, %c0_32, %c0_33] : memref<1x32x32xbf16, #tpu.memory_space<vmem>>, vector<1x8x32xbf16>
    %54 = vector.shape_cast %53 : vector<1x8x32xbf16> to vector<8x32xbf16>
    %cst_34 = arith.constant dense<0.000000e+00> : vector<8x32xf32>
    %55 = tpu.matmul %52, %54, %cst_34 {dimension_numbers = #tpu.dot_dimension_numbers<[1], [0], [0], [1], [0, 0, 1, 1], [], []>} : vector<8x8xbf16>, vector<8x32xbf16>, vector<8x32xf32> -> vector<8x32xf32>
    %56 = arith.addf %28, %55 : vector<8x32xf32>
    %57 = vector.extract_strided_slice %27 {offsets = [0, 8], sizes = [8, 8], strides = [1, 1]} : vector<8x96xf32> to vector<8x8xf32>
    %58 = arith.truncf %57 : vector<8x8xf32> to vector<8x8xbf16>
    %59 = vector.extract_strided_slice %27 {offsets = [0, 40], sizes = [8, 8], strides = [1, 1]} : vector<8x96xf32> to vector<8x8xf32>
    %60 = arith.truncf %59 : vector<8x8xf32> to vector<8x8xbf16>
    %61 = vector.extract_strided_slice %27 {offsets = [0, 72], sizes = [8, 8], strides = [1, 1]} : vector<8x96xf32> to vector<8x8xf32>
    %62 = arith.truncf %61 : vector<8x8xf32> to vector<8x8xbf16>
    %cst_35 = arith.constant dense<0.000000e+00> : vector<8x8xf32>
    %63 = tpu.matmul %58, %60, %cst_35 {dimension_numbers = #tpu.dot_dimension_numbers<[1], [1], [0], [0], [0, 0, 1, 0], [], []>} : vector<8x8xbf16>, vector<8x8xbf16>, vector<8x8xf32> -> vector<8x8xf32>
    %cst_36 = arith.constant 0.353553385 : f32
    %64 = vector.broadcast %cst_36 : f32 to vector<8x8xf32>
    %65 = arith.mulf %63, %64 : vector<8x8xf32>
    %66 = vector.broadcast %5 : vector<1x8xf32> to vector<8x8xf32>
    %67 = arith.addf %65, %66 : vector<8x8xf32>
    %cst_37 = arith.constant dense<0xFF800000> : vector<8xf32>
    %68 = vector.multi_reduction <maximumf>, %67, %cst_37 [1] : vector<8x8xf32> to vector<8xf32>
    %69 = vector.shape_cast %68 : vector<8xf32> to vector<8x1xf32>
    %70 = vector.broadcast %69 : vector<8x1xf32> to vector<8x8xf32>
    %71 = arith.subf %67, %70 : vector<8x8xf32>
    %72 = math.exp %71 : vector<8x8xf32>
    %cst_38 = arith.constant dense<0.000000e+00> : vector<8xf32>
    %73 = vector.multi_reduction <add>, %72, %cst_38 [1] : vector<8x8xf32> to vector<8xf32>
    %74 = vector.shape_cast %73 : vector<8xf32> to vector<8x1xf32>
    %75 = tpu.reciprocal %74 {approx = true} : vector<8x1xf32> -> vector<8x1xf32>
    %76 = vector.broadcast %75 : vector<8x1xf32> to vector<8x8xf32>
    %77 = arith.mulf %72, %76 : vector<8x8xf32>
    %78 = arith.truncf %77 : vector<8x8xf32> to vector<8x8xbf16>
    %cst_39 = arith.constant dense<0.000000e+00> : vector<8x8xf32>
    %79 = tpu.matmul %78, %62, %cst_39 {dimension_numbers = #tpu.dot_dimension_numbers<[1], [0], [0], [1], [0, 0, 1, 1], [], []>} : vector<8x8xbf16>, vector<8x8xbf16>, vector<8x8xf32> -> vector<8x8xf32>
    %80 = arith.truncf %79 : vector<8x8xf32> to vector<8x8xbf16>
    %c0_40 = arith.constant 0 : index
    %c8 = arith.constant 8 : index
    %c0_41 = arith.constant 0 : index
    %81 = vector.load %arg6[%c0_40, %c8, %c0_41] : memref<1x32x32xbf16, #tpu.memory_space<vmem>>, vector<1x8x32xbf16>
    %82 = vector.shape_cast %81 : vector<1x8x32xbf16> to vector<8x32xbf16>
    %cst_42 = arith.constant dense<0.000000e+00> : vector<8x32xf32>
    %83 = tpu.matmul %80, %82, %cst_42 {dimension_numbers = #tpu.dot_dimension_numbers<[1], [0], [0], [1], [0, 0, 1, 1], [], []>} : vector<8x8xbf16>, vector<8x32xbf16>, vector<8x32xf32> -> vector<8x32xf32>
    %84 = arith.addf %56, %83 : vector<8x32xf32>
    %85 = vector.extract_strided_slice %27 {offsets = [0, 16], sizes = [8, 8], strides = [1, 1]} : vector<8x96xf32> to vector<8x8xf32>
    %86 = arith.truncf %85 : vector<8x8xf32> to vector<8x8xbf16>
    %87 = vector.extract_strided_slice %27 {offsets = [0, 48], sizes = [8, 8], strides = [1, 1]} : vector<8x96xf32> to vector<8x8xf32>
    %88 = arith.truncf %87 : vector<8x8xf32> to vector<8x8xbf16>
    %89 = vector.extract_strided_slice %27 {offsets = [0, 80], sizes = [8, 8], strides = [1, 1]} : vector<8x96xf32> to vector<8x8xf32>
    %90 = arith.truncf %89 : vector<8x8xf32> to vector<8x8xbf16>
    %cst_43 = arith.constant dense<0.000000e+00> : vector<8x8xf32>
    %91 = tpu.matmul %86, %88, %cst_43 {dimension_numbers = #tpu.dot_dimension_numbers<[1], [1], [0], [0], [0, 0, 1, 0], [], []>} : vector<8x8xbf16>, vector<8x8xbf16>, vector<8x8xf32> -> vector<8x8xf32>
    %cst_44 = arith.constant 0.353553385 : f32
    %92 = vector.broadcast %cst_44 : f32 to vector<8x8xf32>
    %93 = arith.mulf %91, %92 : vector<8x8xf32>
    %94 = vector.broadcast %5 : vector<1x8xf32> to vector<8x8xf32>
    %95 = arith.addf %93, %94 : vector<8x8xf32>
    %cst_45 = arith.constant dense<0xFF800000> : vector<8xf32>
    %96 = vector.multi_reduction <maximumf>, %95, %cst_45 [1] : vector<8x8xf32> to vector<8xf32>
    %97 = vector.shape_cast %96 : vector<8xf32> to vector<8x1xf32>
    %98 = vector.broadcast %97 : vector<8x1xf32> to vector<8x8xf32>
    %99 = arith.subf %95, %98 : vector<8x8xf32>
    %100 = math.exp %99 : vector<8x8xf32>
    %cst_46 = arith.constant dense<0.000000e+00> : vector<8xf32>
    %101 = vector.multi_reduction <add>, %100, %cst_46 [1] : vector<8x8xf32> to vector<8xf32>
    %102 = vector.shape_cast %101 : vector<8xf32> to vector<8x1xf32>
    %103 = tpu.reciprocal %102 {approx = true} : vector<8x1xf32> -> vector<8x1xf32>
    %104 = vector.broadcast %103 : vector<8x1xf32> to vector<8x8xf32>
    %105 = arith.mulf %100, %104 : vector<8x8xf32>
    %106 = arith.truncf %105 : vector<8x8xf32> to vector<8x8xbf16>
    %cst_47 = arith.constant dense<0.000000e+00> : vector<8x8xf32>
    %107 = tpu.matmul %106, %90, %cst_47 {dimension_numbers = #tpu.dot_dimension_numbers<[1], [0], [0], [1], [0, 0, 1, 1], [], []>} : vector<8x8xbf16>, vector<8x8xbf16>, vector<8x8xf32> -> vector<8x8xf32>
    %108 = arith.truncf %107 : vector<8x8xf32> to vector<8x8xbf16>
    %c0_48 = arith.constant 0 : index
    %c16 = arith.constant 16 : index
    %c0_49 = arith.constant 0 : index
    %109 = vector.load %arg6[%c0_48, %c16, %c0_49] : memref<1x32x32xbf16, #tpu.memory_space<vmem>>, vector<1x8x32xbf16>
    %110 = vector.shape_cast %109 : vector<1x8x32xbf16> to vector<8x32xbf16>
    %cst_50 = arith.constant dense<0.000000e+00> : vector<8x32xf32>
    %111 = tpu.matmul %108, %110, %cst_50 {dimension_numbers = #tpu.dot_dimension_numbers<[1], [0], [0], [1], [0, 0, 1, 1], [], []>} : vector<8x8xbf16>, vector<8x32xbf16>, vector<8x32xf32> -> vector<8x32xf32>
    %112 = arith.addf %84, %111 : vector<8x32xf32>
    %113 = vector.extract_strided_slice %27 {offsets = [0, 24], sizes = [8, 8], strides = [1, 1]} : vector<8x96xf32> to vector<8x8xf32>
    %114 = arith.truncf %113 : vector<8x8xf32> to vector<8x8xbf16>
    %115 = vector.extract_strided_slice %27 {offsets = [0, 56], sizes = [8, 8], strides = [1, 1]} : vector<8x96xf32> to vector<8x8xf32>
    %116 = arith.truncf %115 : vector<8x8xf32> to vector<8x8xbf16>
    %117 = vector.extract_strided_slice %27 {offsets = [0, 88], sizes = [8, 8], strides = [1, 1]} : vector<8x96xf32> to vector<8x8xf32>
    %118 = arith.truncf %117 : vector<8x8xf32> to vector<8x8xbf16>
    %cst_51 = arith.constant dense<0.000000e+00> : vector<8x8xf32>
    %119 = tpu.matmul %114, %116, %cst_51 {dimension_numbers = #tpu.dot_dimension_numbers<[1], [1], [0], [0], [0, 0, 1, 0], [], []>} : vector<8x8xbf16>, vector<8x8xbf16>, vector<8x8xf32> -> vector<8x8xf32>
    %cst_52 = arith.constant 0.353553385 : f32
    %120 = vector.broadcast %cst_52 : f32 to vector<8x8xf32>
    %121 = arith.mulf %119, %120 : vector<8x8xf32>
    %122 = vector.broadcast %5 : vector<1x8xf32> to vector<8x8xf32>
    %123 = arith.addf %121, %122 : vector<8x8xf32>
    %cst_53 = arith.constant dense<0xFF800000> : vector<8xf32>
    %124 = vector.multi_reduction <maximumf>, %123, %cst_53 [1] : vector<8x8xf32> to vector<8xf32>
    %125 = vector.shape_cast %124 : vector<8xf32> to vector<8x1xf32>
    %126 = vector.broadcast %125 : vector<8x1xf32> to vector<8x8xf32>
    %127 = arith.subf %123, %126 : vector<8x8xf32>
    %128 = math.exp %127 : vector<8x8xf32>
    %cst_54 = arith.constant dense<0.000000e+00> : vector<8xf32>
    %129 = vector.multi_reduction <add>, %128, %cst_54 [1] : vector<8x8xf32> to vector<8xf32>
    %130 = vector.shape_cast %129 : vector<8xf32> to vector<8x1xf32>
    %131 = tpu.reciprocal %130 {approx = true} : vector<8x1xf32> -> vector<8x1xf32>
    %132 = vector.broadcast %131 : vector<8x1xf32> to vector<8x8xf32>
    %133 = arith.mulf %128, %132 : vector<8x8xf32>
    %134 = arith.truncf %133 : vector<8x8xf32> to vector<8x8xbf16>
    %cst_55 = arith.constant dense<0.000000e+00> : vector<8x8xf32>
    %135 = tpu.matmul %134, %118, %cst_55 {dimension_numbers = #tpu.dot_dimension_numbers<[1], [0], [0], [1], [0, 0, 1, 1], [], []>} : vector<8x8xbf16>, vector<8x8xbf16>, vector<8x8xf32> -> vector<8x8xf32>
    %136 = arith.truncf %135 : vector<8x8xf32> to vector<8x8xbf16>
    %c0_56 = arith.constant 0 : index
    %c24 = arith.constant 24 : index
    %c0_57 = arith.constant 0 : index
    %137 = vector.load %arg6[%c0_56, %c24, %c0_57] : memref<1x32x32xbf16, #tpu.memory_space<vmem>>, vector<1x8x32xbf16>
    %138 = vector.shape_cast %137 : vector<1x8x32xbf16> to vector<8x32xbf16>
    %cst_58 = arith.constant dense<0.000000e+00> : vector<8x32xf32>
    %139 = tpu.matmul %136, %138, %cst_58 {dimension_numbers = #tpu.dot_dimension_numbers<[1], [0], [0], [1], [0, 0, 1, 1], [], []>} : vector<8x8xbf16>, vector<8x32xbf16>, vector<8x32xf32> -> vector<8x32xf32>
    %140 = arith.addf %112, %139 : vector<8x32xf32>
    %141 = vector.broadcast %9 : vector<1x32xf32> to vector<8x32xf32>
    %142 = arith.addf %140, %141 : vector<8x32xf32>
    %143 = arith.addf %142, %3 : vector<8x32xf32>
    %cst_59 = arith.constant dense<0.000000e+00> : vector<8xf32>
    %144 = vector.multi_reduction <add>, %143, %cst_59 [1] : vector<8x32xf32> to vector<8xf32>
    %145 = vector.shape_cast %144 : vector<8xf32> to vector<8x1xf32>
    %cst_60 = arith.constant 3.200000e+01 : f32
    %146 = vector.broadcast %cst_60 : f32 to vector<8x1xf32>
    %147 = arith.divf %145, %146 : vector<8x1xf32>
    %148 = vector.broadcast %147 : vector<8x1xf32> to vector<8x32xf32>
    %149 = arith.subf %143, %148 : vector<8x32xf32>
    %150 = arith.mulf %149, %149 : vector<8x32xf32>
    %cst_61 = arith.constant dense<0.000000e+00> : vector<8xf32>
    %151 = vector.multi_reduction <add>, %150, %cst_61 [1] : vector<8x32xf32> to vector<8xf32>
    %152 = vector.shape_cast %151 : vector<8xf32> to vector<8x1xf32>
    %cst_62 = arith.constant 3.200000e+01 : f32
    %153 = vector.broadcast %cst_62 : f32 to vector<8x1xf32>
    %154 = arith.divf %152, %153 : vector<8x1xf32>
    %155 = vector.broadcast %147 : vector<8x1xf32> to vector<8x32xf32>
    %156 = arith.subf %143, %155 : vector<8x32xf32>
    %cst_63 = arith.constant 9.99999996E-13 : f32
    %157 = vector.broadcast %cst_63 : f32 to vector<8x1xf32>
    %158 = arith.addf %154, %157 : vector<8x1xf32>
    %159 = math.rsqrt %158 : vector<8x1xf32>
    %160 = vector.broadcast %159 : vector<8x1xf32> to vector<8x32xf32>
    %161 = arith.mulf %156, %160 : vector<8x32xf32>
    %162 = vector.broadcast %11 : vector<1x32xf32> to vector<8x32xf32>
    %163 = arith.mulf %161, %162 : vector<8x32xf32>
    %164 = vector.broadcast %13 : vector<1x32xf32> to vector<8x32xf32>
    %165 = arith.addf %163, %164 : vector<8x32xf32>
    %166 = arith.truncf %165 : vector<8x32xf32> to vector<8x32xbf16>
    %c0_64 = arith.constant 0 : index
    %c0_65 = arith.constant 0 : index
    %c0_66 = arith.constant 0 : index
    %167 = vector.load %arg7[%c0_64, %c0_65, %c0_66] : memref<1x32x64xbf16, #tpu.memory_space<vmem>>, vector<1x32x64xbf16>
    %168 = vector.shape_cast %167 : vector<1x32x64xbf16> to vector<32x64xbf16>
    %cst_67 = arith.constant dense<0.000000e+00> : vector<8x64xf32>
    %169 = tpu.matmul %166, %168, %cst_67 {dimension_numbers = #tpu.dot_dimension_numbers<[1], [0], [0], [1], [0, 0, 1, 1], [], []>} : vector<8x32xbf16>, vector<32x64xbf16>, vector<8x64xf32> -> vector<8x64xf32>
    %170 = vector.broadcast %15 : vector<1x64xf32> to vector<8x64xf32>
    %171 = arith.addf %169, %170 : vector<8x64xf32>
    %cst_68 = arith.constant 5.000000e-01 : f32
    %172 = vector.broadcast %cst_68 : f32 to vector<8x64xf32>
    %173 = arith.mulf %172, %171 : vector<8x64xf32>
    %cst_69 = arith.constant 4.471500e-02 : f32
    %174 = vector.broadcast %cst_69 : f32 to vector<8x64xf32>
    %175 = arith.mulf %174, %171 : vector<8x64xf32>
    %176 = arith.mulf %175, %171 : vector<8x64xf32>
    %177 = arith.mulf %176, %171 : vector<8x64xf32>
    %178 = arith.addf %171, %177 : vector<8x64xf32>
    %cst_70 = arith.constant 0.797884583 : f32
    %179 = vector.broadcast %cst_70 : f32 to vector<8x64xf32>
    %180 = arith.mulf %179, %178 : vector<8x64xf32>
    %181 = math.tanh %180 : vector<8x64xf32>
    %cst_71 = arith.constant 1.000000e+00 : f32
    %182 = vector.broadcast %cst_71 : f32 to vector<8x64xf32>
    %183 = arith.addf %182, %181 : vector<8x64xf32>
    %184 = arith.mulf %173, %183 : vector<8x64xf32>
    %185 = arith.truncf %184 : vector<8x64xf32> to vector<8x64xbf16>
    %c0_72 = arith.constant 0 : index
    %c0_73 = arith.constant 0 : index
    %c0_74 = arith.constant 0 : index
    %186 = vector.load %arg8[%c0_72, %c0_73, %c0_74] : memref<1x64x32xbf16, #tpu.memory_space<vmem>>, vector<1x64x32xbf16>
    %187 = vector.shape_cast %186 : vector<1x64x32xbf16> to vector<64x32xbf16>
    %cst_75 = arith.constant dense<0.000000e+00> : vector<8x32xf32>
    %188 = tpu.matmul %185, %187, %cst_75 {dimension_numbers = #tpu.dot_dimension_numbers<[1], [0], [0], [1], [0, 0, 1, 1], [], []>} : vector<8x64xbf16>, vector<64x32xbf16>, vector<8x32xf32> -> vector<8x32xf32>
    %189 = vector.broadcast %17 : vector<1x32xf32> to vector<8x32xf32>
    %190 = arith.addf %188, %189 : vector<8x32xf32>
    %191 = arith.addf %190, %165 : vector<8x32xf32>
    %cst_76 = arith.constant dense<0.000000e+00> : vector<8xf32>
    %192 = vector.multi_reduction <add>, %191, %cst_76 [1] : vector<8x32xf32> to vector<8xf32>
    %193 = vector.shape_cast %192 : vector<8xf32> to vector<8x1xf32>
    %cst_77 = arith.constant 3.200000e+01 : f32
    %194 = vector.broadcast %cst_77 : f32 to vector<8x1xf32>
    %195 = arith.divf %193, %194 : vector<8x1xf32>
    %196 = vector.broadcast %195 : vector<8x1xf32> to vector<8x32xf32>
    %197 = arith.subf %191, %196 : vector<8x32xf32>
    %198 = arith.mulf %197, %197 : vector<8x32xf32>
    %cst_78 = arith.constant dense<0.000000e+00> : vector<8xf32>
    %199 = vector.multi_reduction <add>, %198, %cst_78 [1] : vector<8x32xf32> to vector<8xf32>
    %200 = vector.shape_cast %199 : vector<8xf32> to vector<8x1xf32>
    %cst_79 = arith.constant 3.200000e+01 : f32
    %201 = vector.broadcast %cst_79 : f32 to vector<8x1xf32>
    %202 = arith.divf %200, %201 : vector<8x1xf32>
    %203 = vector.broadcast %195 : vector<8x1xf32> to vector<8x32xf32>
    %204 = arith.subf %191, %203 : vector<8x32xf32>
    %cst_80 = arith.constant 9.99999996E-13 : f32
    %205 = vector.broadcast %cst_80 : f32 to vector<8x1xf32>
    %206 = arith.addf %202, %205 : vector<8x1xf32>
    %207 = math.rsqrt %206 : vector<8x1xf32>
    %208 = vector.broadcast %207 : vector<8x1xf32> to vector<8x32xf32>
    %209 = arith.mulf %204, %208 : vector<8x32xf32>
    %210 = vector.broadcast %19 : vector<1x32xf32> to vector<8x32xf32>
    %211 = arith.mulf %209, %210 : vector<8x32xf32>
    %212 = vector.broadcast %21 : vector<1x32xf32> to vector<8x32xf32>
    %213 = arith.addf %211, %212 : vector<8x32xf32>
    %c0_81 = arith.constant 0 : index
    %c0_82 = arith.constant 0 : index
    %214 = vector.load %arg11[%c0_81, %c0_82] : memref<8x32xf32, #tpu.memory_space<vmem>>, vector<8x32xf32>
    tpu.vector_store %arg11[%c0_81, %c0_82], %213 {strides = array<i32>} : memref<8x32xf32, #tpu.memory_space<vmem>>, vector<8x32xf32>,
    %215 = vector.extract_strided_slice %213 {offsets = [0, 0], sizes = [1, 32], strides = [1, 1]} : vector<8x32xf32> to vector<1x32xf32>
    %216 = vector.shape_cast %215 : vector<1x32xf32> to vector<1x1x32xf32>
    %c0_83 = arith.constant 0 : index
    %217 = arith.index_cast %arg1 : i32 to index
    %c0_84 = arith.constant 0 : index
    %218 = vector.load %arg10[%c0_83, %217, %c0_84] : memref<1x2x32xf32, #tpu.memory_space<vmem>>, vector<1x1x32xf32>
    tpu.vector_store %arg10[%c0_83, %217, %c0_84], %216 {strides = array<i32>} : memref<1x2x32xf32, #tpu.memory_space<vmem>>, vector<1x1x32xf32>,
    return
  }
  func.func @transform_0(%arg0: i32, %arg1: i32) -> (i32, i32) {
    %c0_i32 = arith.constant 0 : i32
    %c0_i32_0 = arith.constant 0 : i32
    return %arg0, %c0_i32 : i32, i32
  }
  func.func @transform_1(%arg0: i32, %arg1: i32) -> (i32, i32, i32) {
    %c0_i32 = arith.constant 0 : i32
    %c0_i32_0 = arith.constant 0 : i32
    %c0_i32_1 = arith.constant 0 : i32
    return %arg0, %c0_i32, %c0_i32_0 : i32, i32, i32
  }
  func.func @transform_2(%arg0: i32, %arg1: i32) -> (i32, i32) {
    %c0_i32 = arith.constant 0 : i32
    %c0_i32_0 = arith.constant 0 : i32
    %c0_i32_1 = arith.constant 0 : i32
    return %c0_i32, %c0_i32_0 : i32, i32
  }
  func.func @transform_3(%arg0: i32, %arg1: i32) -> (i32, i32, i32) {
    %c0_i32 = arith.constant 0 : i32
    %c0_i32_0 = arith.constant 0 : i32
    %c0_i32_1 = arith.constant 0 : i32
    return %arg1, %c0_i32, %c0_i32_0 : i32, i32, i32
  }
  func.func @transform_4(%arg0: i32, %arg1: i32) -> (i32, i32, i32) {
    %c0_i32 = arith.constant 0 : i32
    %c0_i32_0 = arith.constant 0 : i32
    %c0_i32_1 = arith.constant 0 : i32
    return %arg1, %c0_i32, %c0_i32_0 : i32, i32, i32
  }
  func.func @transform_5(%arg0: i32, %arg1: i32) -> (i32, i32, i32) {
    %c0_i32 = arith.constant 0 : i32
    %c0_i32_0 = arith.constant 0 : i32
    %c0_i32_1 = arith.constant 0 : i32
    return %arg1, %c0_i32, %c0_i32_0 : i32, i32, i32
  }
  func.func @transform_6(%arg0: i32, %arg1: i32) -> (i32, i32, i32) {
    %c0_i32 = arith.constant 0 : i32
    %c0_i32_0 = arith.constant 0 : i32
    %c0_i32_1 = arith.constant 0 : i32
    return %arg1, %c0_i32, %c0_i32_0 : i32, i32, i32
  }
  func.func @transform_7(%arg0: i32, %arg1: i32) -> (i32, i32, i32) {
    %c0_i32 = arith.constant 0 : i32
    %c0_i32_0 = arith.constant 0 : i32
    %c0_i32_1 = arith.constant 0 : i32
    return %arg1, %c0_i32, %c0_i32_0 : i32, i32, i32
  }
  func.func @transform_8(%arg0: i32, %arg1: i32) -> (i32, i32, i32) {
    %c0_i32 = arith.constant 0 : i32
    %c0_i32_0 = arith.constant 0 : i32
    %c0_i32_1 = arith.constant 0 : i32
    return %arg0, %c0_i32, %c0_i32_0 : i32, i32, i32
  }
}

</mosaic_0001>

<llo_original>
// kernel: bert_layers_wise.1
$region0: #{bert_layers_wise.1}
  #allocation0 [shape = 'u32[]', space=smem, size = 0x4, offset = 0x4, fixed_abs, tag = 'smem constant byte address 0x4 - core index']
  #allocation1 [shape = 'u32[144,128]{1,0:T(1,128)}', space=vmem, size = 0x12000, scoped, tag = 'internal scratch']
  #allocation2 [shape = 'f32[8,32]{1,0:T(8,128)}', space=vmem, size = 0x1000, scoped, tag = 'scratch operand']
  %s0 = inlined_call_operand.vmem [shape: f32[16,32], index: 0, kind: input, shape index: {}]
  %s1 = inlined_call_operand.vmem [shape: f32[2,1,8], index: 1, kind: input, shape index: {}]
  %s2 = inlined_call_operand.vmem [shape: f32[2,32], index: 2, kind: input, shape index: {}]
  %s3 = inlined_call_operand.vmem [shape: bf16[2,32,96], index: 3, kind: input, shape index: {}]
  %s4 = inlined_call_operand.vmem [shape: bf16[2,32,32], index: 4, kind: input, shape index: {}]
  %s5 = inlined_call_operand.vmem [shape: bf16[2,32,64], index: 5, kind: input, shape index: {}]
  %s6 = inlined_call_operand.vmem [shape: bf16[2,64,32], index: 6, kind: input, shape index: {}]
  %s7 = inlined_call_operand.vmem [shape: f32[2,8,96], index: 7, kind: input, shape index: {}]
  %s8 = inlined_call_operand.vmem [shape: f32[2,2,32], index: 8, kind: output, shape index: {}]
  %s9 = sld [smem:[#allocation0]]
  $region69: #{bert_layers_wise.1} parent=0
    _
  %s11 = ssub.s32 1, %s9
  %s12 = scalar_select 0, %s11, %s9
  loop: start=0, step=1, limit=6
  $region2: #{bert_layers_wise.1} parent=0 // loop_pre_header
    _
  $region3: #{bert_layers_wise.1} parent=0 // loop_header
    %s14 = sphi 0, %s18
    %p15 = scmp.ge.s32.totalorder %s14, 6
    %s21 = sphi 0, %s33
    %s22 = sphi 0, %s29
    %s23 = sphi 0, %s21
    %s24 = sphi 0, %s22
    %s25 = sphi 0, %s23
    %s26 = sphi 0, %s24
    %s36 = sphi 0, %s38
    %s39 = sphi 0, %s36
    %s40 = sphi 0, %s39
    %s56 = sphi 0, %s40
    %s62 = sphi 0, %s64
    %s65 = sphi 0, %s62
    %s66 = sphi 0, %s65
    %s82 = sphi 0, %s66
    %s86 = sphi 0, %s86
    %s88 = sphi 0, %s86
    %s89 = sphi 0, %s88
    %s103 = sphi 0, %s89
    %s109 = sphi 0, %s111
    %s112 = sphi 0, %s109
    %s113 = sphi 0, %s112
    %s129 = sphi 0, %s113
    %s135 = sphi 0, %s137
    %s138 = sphi 0, %s135
    %s139 = sphi 0, %s138
    %s155 = sphi 0, %s139
    %s161 = sphi 0, %s163
    %s164 = sphi 0, %s161
    %s165 = sphi 0, %s164
    %s181 = sphi 0, %s165
    %s187 = sphi 0, %s189
    %s190 = sphi 0, %s187
    %s191 = sphi 0, %s190
    %s207 = sphi 0, %s191
    %s213 = sphi 0, %s215
    %s216 = sphi 0, %s213
    %s217 = sphi 0, %s216
    %s233 = sphi 0, %s217
    %s239 = sphi 0, %s241
    %s242 = sphi 0, %s239
    %s243 = sphi 0, %s242
    %s259 = sphi 0, %s243
  $region4: #{bert_layers_wise.1} parent=0 // loop_header_branch
    %17 = sbr.rel (%p15) target = $region8
  $region5: #{bert_layers_wise.1} parent=0 // loop_body
    %s19 = ssub.s32 %s14, 1
    %s20 = ssub.s32 %s14, 2
    %s27 = sadd.s32 1, %s22
    %p28 = scmp.ge.s32.totalorder %s27, 2
    %s29 = scalar_select %p28, 0, %s27
    %s30 = sadd.s32 1, %s21
    %s31 = scalar_select %p28, %s30, %s21
    %p32 = scmp.ge.s32.totalorder %s31, 2
    %s33 = scalar_select %p32, 0, %s31
    %s34 = ssub.s32 %s21, %s33
    %p35 = scmp.eq.s32.totalorder %s34, 0
    %s37 = sadd.s32 %s36, 1
    %s38 = scalar_select %p35, %s36, %s37
    %p41 = pneg %p35
    %p42 = scmp.eq.s32.totalorder %s14, 3
    %p43 = por %p41, %p42
    %p44 = scmp.ne.s32.totalorder %s36, %s39
    %p45 = scmp.eq.s32.totalorder %s14, 0
    %p46 = por %p44, %p45
    %p47 = scmp.ne.s32.totalorder %s36, %s39
    %p48 = scmp.eq.s32.totalorder %s19, 3
    %p49 = por %p47, %p48
    %p50 = scmp.ne.s32.totalorder %s39, %s40
    %p51 = scmp.eq.s32.totalorder %s19, 0
    %p52 = por %p50, %p51
    %p53 = scmp.ne.s32.totalorder %s39, %s40
    %p54 = scmp.eq.s32.totalorder %s20, 3
    %p55 = por %p53, %p54
    %p57 = scmp.ne.s32.totalorder %s40, %s56
    %p58 = scmp.eq.s32.totalorder %s20, 0
    %p59 = por %p57, %p58
    %s60 = ssub.s32 %s21, %s33
    %p61 = scmp.eq.s32.totalorder %s60, 0
    %s63 = sadd.s32 %s62, 1
    %s64 = scalar_select %p61, %s62, %s63
    %p67 = pneg %p61
    %p68 = scmp.eq.s32.totalorder %s14, 3
    %p69 = por %p67, %p68
    %p70 = scmp.ne.s32.totalorder %s62, %s65
    %p71 = scmp.eq.s32.totalorder %s14, 0
    %p72 = por %p70, %p71
    %p73 = scmp.ne.s32.totalorder %s62, %s65
    %p74 = scmp.eq.s32.totalorder %s19, 3
    %p75 = por %p73, %p74
    %p76 = scmp.ne.s32.totalorder %s65, %s66
    %p77 = scmp.eq.s32.totalorder %s19, 0
    %p78 = por %p76, %p77
    %p79 = scmp.ne.s32.totalorder %s65, %s66
    %p80 = scmp.eq.s32.totalorder %s20, 3
    %p81 = por %p79, %p80
    %p83 = scmp.ne.s32.totalorder %s66, %s82
    %p84 = scmp.eq.s32.totalorder %s20, 0
    %p85 = por %p83, %p84
    %s87 = sadd.s32 %s86, 1
    %p90 = scmp.eq.s32.totalorder %s14, 3
    %p91 = scmp.ne.s32.totalorder %s86, %s88
    %p92 = scmp.eq.s32.totalorder %s14, 0
    %p93 = por %p91, %p92
    %p94 = scmp.ne.s32.totalorder %s86, %s88
    %p95 = scmp.eq.s32.totalorder %s19, 3
    %p96 = por %p94, %p95
    %p97 = scmp.ne.s32.totalorder %s88, %s89
    %p98 = scmp.eq.s32.totalorder %s19, 0
    %p99 = por %p97, %p98
    %p100 = scmp.ne.s32.totalorder %s88, %s89
    %p101 = scmp.eq.s32.totalorder %s20, 3
    %p102 = por %p100, %p101
    %p104 = scmp.ne.s32.totalorder %s89, %s103
    %p105 = scmp.eq.s32.totalorder %s20, 0
    %p106 = por %p104, %p105
    %s107 = ssub.s32 %s22, %s29
    %p108 = scmp.eq.s32.totalorder %s107, 0
    %s110 = sadd.s32 %s109, 1
    %s111 = scalar_select %p108, %s109, %s110
    %p114 = pneg %p108
    %p115 = scmp.eq.s32.totalorder %s14, 3
    %p116 = por %p114, %p115
    %p117 = scmp.ne.s32.totalorder %s109, %s112
    %p118 = scmp.eq.s32.totalorder %s14, 0
    %p119 = por %p117, %p118
    %p120 = scmp.ne.s32.totalorder %s109, %s112
    %p121 = scmp.eq.s32.totalorder %s19, 3
    %p122 = por %p120, %p121
    %p123 = scmp.ne.s32.totalorder %s112, %s113
    %p124 = scmp.eq.s32.totalorder %s19, 0
    %p125 = por %p123, %p124
    %p126 = scmp.ne.s32.totalorder %s112, %s113
    %p127 = scmp.eq.s32.totalorder %s20, 3
    %p128 = por %p126, %p127
    %p130 = scmp.ne.s32.totalorder %s113, %s129
    %p131 = scmp.eq.s32.totalorder %s20, 0
    %p132 = por %p130, %p131
    %s133 = ssub.s32 %s22, %s29
    %p134 = scmp.eq.s32.totalorder %s133, 0
    %s136 = sadd.s32 %s135, 1
    %s137 = scalar_select %p134, %s135, %s136
    %p140 = pneg %p134
    %p141 = scmp.eq.s32.totalorder %s14, 3
    %p142 = por %p140, %p141
    %p143 = scmp.ne.s32.totalorder %s135, %s138
    %p144 = scmp.eq.s32.totalorder %s14, 0
    %p145 = por %p143, %p144
    %p146 = scmp.ne.s32.totalorder %s135, %s138
    %p147 = scmp.eq.s32.totalorder %s19, 3
    %p148 = por %p146, %p147
    %p149 = scmp.ne.s32.totalorder %s138, %s139
    %p150 = scmp.eq.s32.totalorder %s19, 0
    %p151 = por %p149, %p150
    %p152 = scmp.ne.s32.totalorder %s138, %s139
    %p153 = scmp.eq.s32.totalorder %s20, 3
    %p154 = por %p152, %p153
    %p156 = scmp.ne.s32.totalorder %s139, %s155
    %p157 = scmp.eq.s32.totalorder %s20, 0
    %p158 = por %p156, %p157
    %s159 = ssub.s32 %s22, %s29
    %p160 = scmp.eq.s32.totalorder %s159, 0
    %s162 = sadd.s32 %s161, 1
    %s163 = scalar_select %p160, %s161, %s162
    %p166 = pneg %p160
    %p167 = scmp.eq.s32.totalorder %s14, 3
    %p168 = por %p166, %p167
    %p169 = scmp.ne.s32.totalorder %s161, %s164
    %p170 = scmp.eq.s32.totalorder %s14, 0
    %p171 = por %p169, %p170
    %p172 = scmp.ne.s32.totalorder %s161, %s164
    %p173 = scmp.eq.s32.totalorder %s19, 3
    %p174 = por %p172, %p173
    %p175 = scmp.ne.s32.totalorder %s164, %s165
    %p176 = scmp.eq.s32.totalorder %s19, 0
    %p177 = por %p175, %p176
    %p178 = scmp.ne.s32.totalorder %s164, %s165
    %p179 = scmp.eq.s32.totalorder %s20, 3
    %p180 = por %p178, %p179
    %p182 = scmp.ne.s32.totalorder %s165, %s181
    %p183 = scmp.eq.s32.totalorder %s20, 0
    %p184 = por %p182, %p183
    %s185 = ssub.s32 %s22, %s29
    %p186 = scmp.eq.s32.totalorder %s185, 0
    %s188 = sadd.s32 %s187, 1
    %s189 = scalar_select %p186, %s187, %s188
    %p192 = pneg %p186
    %p193 = scmp.eq.s32.totalorder %s14, 3
    %p194 = por %p192, %p193
    %p195 = scmp.ne.s32.totalorder %s187, %s190
    %p196 = scmp.eq.s32.totalorder %s14, 0
    %p197 = por %p195, %p196
    %p198 = scmp.ne.s32.totalorder %s187, %s190
    %p199 = scmp.eq.s32.totalorder %s19, 3
    %p200 = por %p198, %p199
    %p201 = scmp.ne.s32.totalorder %s190, %s191
    %p202 = scmp.eq.s32.totalorder %s19, 0
    %p203 = por %p201, %p202
    %p204 = scmp.ne.s32.totalorder %s190, %s191
    %p205 = scmp.eq.s32.totalorder %s20, 3
    %p206 = por %p204, %p205
    %p208 = scmp.ne.s32.totalorder %s191, %s207
    %p209 = scmp.eq.s32.totalorder %s20, 0
    %p210 = por %p208, %p209
    %s211 = ssub.s32 %s22, %s29
    %p212 = scmp.eq.s32.totalorder %s211, 0
    %s214 = sadd.s32 %s213, 1
    %s215 = scalar_select %p212, %s213, %s214
    %p218 = pneg %p212
    %p219 = scmp.eq.s32.totalorder %s14, 3
    %p220 = por %p218, %p219
    %p221 = scmp.ne.s32.totalorder %s213, %s216
    %p222 = scmp.eq.s32.totalorder %s14, 0
    %p223 = por %p221, %p222
    %p224 = scmp.ne.s32.totalorder %s213, %s216
    %p225 = scmp.eq.s32.totalorder %s19, 3
    %p226 = por %p224, %p225
    %p227 = scmp.ne.s32.totalorder %s216, %s217
    %p228 = scmp.eq.s32.totalorder %s19, 0
    %p229 = por %p227, %p228
    %p230 = scmp.ne.s32.totalorder %s216, %s217
    %p231 = scmp.eq.s32.totalorder %s20, 3
    %p232 = por %p230, %p231
    %p234 = scmp.ne.s32.totalorder %s217, %s233
    %p235 = scmp.eq.s32.totalorder %s20, 0
    %p236 = por %p234, %p235
    %s237 = ssub.s32 %s21, %s33
    %p238 = scmp.eq.s32.totalorder %s237, 0
    %s240 = sadd.s32 %s239, 1
    %s241 = scalar_select %p238, %s239, %s240
    %p244 = pneg %p238
    %p245 = scmp.eq.s32.totalorder %s14, 3
    %p246 = por %p244, %p245
    %p247 = scmp.ne.s32.totalorder %s239, %s242
    %p248 = scmp.eq.s32.totalorder %s14, 0
    %p249 = por %p247, %p248
    %p250 = scmp.ne.s32.totalorder %s239, %s242
    %p251 = scmp.eq.s32.totalorder %s19, 3
    %p252 = por %p250, %p251
    %p253 = scmp.ne.s32.totalorder %s242, %s243
    %p254 = scmp.eq.s32.totalorder %s19, 0
    %p255 = por %p253, %p254
    %p256 = scmp.ne.s32.totalorder %s242, %s243
    %p257 = scmp.eq.s32.totalorder %s20, 3
    %p258 = por %p256, %p257
    %p260 = scmp.ne.s32.totalorder %s243, %s259
    %p261 = scmp.eq.s32.totalorder %s20, 0
    %p262 = por %p260, %p261
    %p263 = scmp.le.s32.totalorder 1, %s14
    %p264 = scmp.lt.s32.totalorder %s14, 5
    %p265 = pnand %p263, %p264
    %p266 = pneg %p265
    // Predicated region
    $region9: #{bert_layers_wise.1} parent=5 // pred_check
      _
    $region10: #{bert_layers_wise.1} parent=5 // pred_check_branch
      %268 = sbr.rel (%p265) target = $region12
    $region11: #{bert_layers_wise.1} parent=5 // pred_region
      %s269 = ssub.s32 %s14, 1
      // Predicated region
      $region13: #{bert_layers_wise.1} parent=11 // pred_check
        %p270 = pneg %p99
      $region14: #{bert_layers_wise.1} parent=11 // pred_check_branch
        %272 = sbr.rel (%p270) target = $region16
      $region15: #{bert_layers_wise.1} parent=11 // pred_region
        _
      $region16: #{bert_layers_wise.1} parent=11 // pred_fallthru
        _
    $region12: #{bert_layers_wise.1} parent=5 // pred_fallthru
      _
    %p273 = scmp.lt.s32.totalorder %s14, 4
    // Predicated region
    $region17: #{bert_layers_wise.1} parent=5 // pred_check
      %p274 = pneg %p273
    $region18: #{bert_layers_wise.1} parent=5 // pred_check_branch
      %276 = sbr.rel (%p274) target = $region20
    $region19: #{bert_layers_wise.1} parent=5 // pred_region
      // Predicated region
      $region21: #{bert_layers_wise.1} parent=19 // pred_check
        %p277 = pneg %p46
      $region22: #{bert_layers_wise.1} parent=19 // pred_check_branch
        %279 = sbr.rel (%p277) target = $region24
      $region23: #{bert_layers_wise.1} parent=19 // pred_region
        %p280 = scmp.lt.s32.totalorder %s21, 1
        %s281 = scalar_select %p280, %s21, 1
        %s282 = smul.addr %s281, 8
        %s283 = scalar_lea.vmem %s0, %s282
      $region24: #{bert_layers_wise.1} parent=19 // pred_fallthru
        _
      // Predicated region
      $region25: #{bert_layers_wise.1} parent=19 // pred_check
        %p284 = pneg %p72
      $region26: #{bert_layers_wise.1} parent=19 // pred_check_branch
        %286 = sbr.rel (%p284) target = $region28
      $region27: #{bert_layers_wise.1} parent=19 // pred_region
        %p287 = scmp.lt.s32.totalorder %s21, 1
        %s288 = scalar_select %p287, %s21, 1
        %s289 = scalar_lea.vmem %s1, %s288
      $region28: #{bert_layers_wise.1} parent=19 // pred_fallthru
        _
      // Predicated region
      $region29: #{bert_layers_wise.1} parent=19 // pred_check
        %p290 = pneg %p119
      $region30: #{bert_layers_wise.1} parent=19 // pred_check_branch
        %292 = sbr.rel (%p290) target = $region32
      $region31: #{bert_layers_wise.1} parent=19 // pred_region
        %p293 = scmp.lt.s32.totalorder %s22, 1
        %s294 = scalar_select %p293, %s22, 1
        %s295 = smul.addr %s294, 4
        %s296 = smul.addr %s295, 4
        %s297 = scalar_lea.vmem %s3, %s296
      $region32: #{bert_layers_wise.1} parent=19 // pred_fallthru
        _
      // Predicated region
      $region33: #{bert_layers_wise.1} parent=19 // pred_check
        %p298 = pneg %p145
      $region34: #{bert_layers_wise.1} parent=19 // pred_check_branch
        %300 = sbr.rel (%p298) target = $region36
      $region35: #{bert_layers_wise.1} parent=19 // pred_region
        %p301 = scmp.lt.s32.totalorder %s22, 1
        %s302 = scalar_select %p301, %s22, 1
        %s303 = smul.addr %s302, 4
        %s304 = smul.addr %s303, 4
        %s305 = scalar_lea.vmem %s4, %s304
      $region36: #{bert_layers_wise.1} parent=19 // pred_fallthru
        _
      // Predicated region
      $region37: #{bert_layers_wise.1} parent=19 // pred_check
        %p306 = pneg %p171
      $region38: #{bert_layers_wise.1} parent=19 // pred_check_branch
        %308 = sbr.rel (%p306) target = $region40
      $region39: #{bert_layers_wise.1} parent=19 // pred_region
        %p309 = scmp.lt.s32.totalorder %s22, 1
        %s310 = scalar_select %p309, %s22, 1
        %s311 = smul.addr %s310, 4
        %s312 = smul.addr %s311, 4
        %s313 = scalar_lea.vmem %s5, %s312
      $region40: #{bert_layers_wise.1} parent=19 // pred_fallthru
        _
      // Predicated region
      $region41: #{bert_layers_wise.1} parent=19 // pred_check
        %p314 = pneg %p197
      $region42: #{bert_layers_wise.1} parent=19 // pred_check_branch
        %316 = sbr.rel (%p314) target = $region44
      $region43: #{bert_layers_wise.1} parent=19 // pred_region
        %p317 = scmp.lt.s32.totalorder %s22, 1
        %s318 = scalar_select %p317, %s22, 1
        %s319 = smul.addr %s318, 8
        %s320 = smul.addr %s319, 4
        %s321 = scalar_lea.vmem %s6, %s320
      $region44: #{bert_layers_wise.1} parent=19 // pred_fallthru
        _
      // Predicated region
      $region45: #{bert_layers_wise.1} parent=19 // pred_check
        %p322 = pneg %p223
      $region46: #{bert_layers_wise.1} parent=19 // pred_check_branch
        %324 = sbr.rel (%p322) target = $region48
      $region47: #{bert_layers_wise.1} parent=19 // pred_region
        %p325 = scmp.lt.s32.totalorder %s22, 1
        %s326 = scalar_select %p325, %s22, 1
        %s327 = smul.addr %s326, 8
        %s328 = scalar_lea.vmem %s7, %s327
      $region48: #{bert_layers_wise.1} parent=19 // pred_fallthru
        _
    $region20: #{bert_layers_wise.1} parent=5 // pred_fallthru
      _
    %p329 = scmp.le.s32.totalorder 1, %s14
    %p330 = scmp.lt.s32.totalorder %s14, 5
    %p331 = pnand %p329, %p330
    %p332 = pneg %p331
    // Predicated region
    $region49: #{bert_layers_wise.1} parent=5 // pred_check
      _
    $region50: #{bert_layers_wise.1} parent=5 // pred_check_branch
      %334 = sbr.rel (%p331) target = $region52
    $region51: #{bert_layers_wise.1} parent=5 // pred_region
      %s335 = ssub.s32 %s14, 1
      %p336 = scmp.lt.s32.totalorder %s23, 1
      %s337 = scalar_select %p336, %s23, 1
      %s338 = smul.addr %s337, 8
      %s339 = scalar_lea.vmem %s0, %s338
      %p340 = pneg %p52
      %p341 = pneg %p49
      %p342 = scmp.lt.s32.totalorder %s23, 1
      %s343 = scalar_select %p342, %s23, 1
      %s344 = scalar_lea.vmem %s1, %s343
      %p345 = pneg %p78
      %p346 = pneg %p75
      %p347 = pneg %p99
      %p348 = pneg %p96
      %p349 = scmp.lt.s32.totalorder %s24, 1
      %s350 = scalar_select %p349, %s24, 1
      %s351 = smul.addr %s350, 4
      %s352 = smul.addr %s351, 4
      %s353 = scalar_lea.vmem %s3, %s352
      %p354 = pneg %p125
      %p355 = pneg %p122
      %p356 = scmp.lt.s32.totalorder %s24, 1
      %s357 = scalar_select %p356, %s24, 1
      %s358 = smul.addr %s357, 4
      %s359 = smul.addr %s358, 4
      %s360 = scalar_lea.vmem %s4, %s359
      %p361 = pneg %p151
      %p362 = pneg %p148
      %p363 = scmp.lt.s32.totalorder %s24, 1
      %s364 = scalar_select %p363, %s24, 1
      %s365 = smul.addr %s364, 4
      %s366 = smul.addr %s365, 4
      %s367 = scalar_lea.vmem %s5, %s366
      %p368 = pneg %p177
      %p369 = pneg %p174
      %p370 = scmp.lt.s32.totalorder %s24, 1
      %s371 = scalar_select %p370, %s24, 1
      %s372 = smul.addr %s371, 8
      %s373 = smul.addr %s372, 4
      %s374 = scalar_lea.vmem %s6, %s373
      %p375 = pneg %p203
      %p376 = pneg %p200
      %p377 = scmp.lt.s32.totalorder %s24, 1
      %s378 = scalar_select %p377, %s24, 1
      %s379 = smul.addr %s378, 8
      %s380 = scalar_lea.vmem %s7, %s379
      %p381 = pneg %p229
      %p382 = pneg %p226
      %p383 = pneg %p255
      %p384 = pneg %p252
      %p385 = scmp.lt.s32.totalorder %s23, 1
      %s386 = scalar_select %p385, %s23, 1
      %s387 = smul.addr %s386, 2
      %s388 = scalar_lea.vmem %s8, %s387
      %p389 = scmp.lt.s32.totalorder %s23, 1
      %s390 = scalar_select %p389, %s23, 1
      %s391 = smul.addr %s390, 8
      %s392 = scalar_lea.vmem %s0, %s391
      %p393 = scmp.lt.s32.totalorder %s23, 1
      %s394 = scalar_select %p393, %s23, 1
      %s395 = scalar_lea.vmem %s1, %s394
      %p396 = scmp.lt.s32.totalorder %s24, 1
      %s397 = scalar_select %p396, %s24, 1
      %s398 = smul.addr %s397, 4
      %s399 = smul.addr %s398, 4
      %s400 = scalar_lea.vmem %s3, %s399
      %p401 = scmp.lt.s32.totalorder %s24, 1
      %s402 = scalar_select %p401, %s24, 1
      %s403 = smul.addr %s402, 4
      %s404 = smul.addr %s403, 4
      %s405 = scalar_lea.vmem %s4, %s404
      %p406 = scmp.lt.s32.totalorder %s24, 1
      %s407 = scalar_select %p406, %s24, 1
      %s408 = smul.addr %s407, 4
      %s409 = smul.addr %s408, 4
      %s410 = scalar_lea.vmem %s5, %s409
      %p411 = scmp.lt.s32.totalorder %s24, 1
      %s412 = scalar_select %p411, %s24, 1
      %s413 = smul.addr %s412, 8
      %s414 = smul.addr %s413, 4
      %s415 = scalar_lea.vmem %s6, %s414
      %p416 = scmp.lt.s32.totalorder %s24, 1
      %s417 = scalar_select %p416, %s24, 1
      %s418 = smul.addr %s417, 8
      %s419 = scalar_lea.vmem %s7, %s418
      %p420 = scmp.lt.s32.totalorder %s23, 1
      %s421 = scalar_select %p420, %s23, 1
      %s422 = smul.addr %s421, 2
      %s423 = scalar_lea.vmem %s8, %s422
      %p425 = scmp.eq.s32.totalorder %s24, 0
      // Predicated region
      $region53: #{bert_layers_wise.1} parent=51 // pred_check
        %p426 = pneg %p425
      $region54: #{bert_layers_wise.1} parent=51 // pred_check_branch
        %428 = sbr.rel (%p426) target = $region56
      $region55: #{bert_layers_wise.1} parent=51 // pred_region
        %v429 = vld [vmem:[%s392] sm:$0xff]
        %v430 = vld [vmem:[%s2] sm:$0x1]
        %v431 = vld [vmem:[%s2 + $0x1] sm:$0x1]
        %vm432 = vcmask 261120
        %v433 = vsel %vm432, %v429, 0.0
        %434 = vadd.xlane.f32.xlu0 %v433
        %v435 = vpop.xlane.xlu0 %434
        %v436 = vrcp.pop 32.0
        %v437 = vmul.f32 %v435, %v436
        %v438 = vsub.f32 %v429, %v437
        %v439 = vmul.f32 %v438, %v438
        %v440 = vsel %vm432, %v439, 0.0
        %441 = vadd.xlane.f32.xlu0 %v440
        %v442 = vpop.xlane.xlu0 %441
        %v443 = vmul.f32 %v442, %v436
        %v444 = vadd.f32 %v443, 1e-12
        %v445 = vrsqrt.pop %v444
        %v446 = vmul.f32 %v438, %v445
        %v447 = vlaneseq
        %v448 = vshrl.u32 %v447, 7
        %v449 = vsub.s32 0, %v448
        %v450 = vrot.slane %v430, %v449
        %v451 = vmul.f32 %v446, %v450
        %v452 = vlaneseq
        %v453 = vshrl.u32 %v452, 7
        %v454 = vsub.s32 0, %v453
        %v455 = vrot.slane %v431, %v454
        %v456 = vadd.f32 %v451, %v455
        %457 = vst.msk [vmem:[#allocation2] sm:$0xff] %vm432, %v456
      $region56: #{bert_layers_wise.1} parent=51 // pred_fallthru
        _
      %v458 = vld [vmem:[#allocation2] sm:$0xff]
      %v459 = vld [vmem:[%s395] sm:$0x1]
      %v460 = vld [vmem:[%s419] sm:$0x1]
      %v461 = vld [vmem:[%s419 + $0x1] sm:$0x1]
      %v462 = vld [vmem:[%s419 + $0x2] sm:$0x1]
      %v463 = vld [vmem:[%s419 + $0x3] sm:$0x1]
      %v464 = vld [vmem:[%s419 + $0x4] sm:$0x1]
      %v465 = vld [vmem:[%s419 + $0x5] sm:$0x1]
      %v466 = vld [vmem:[%s419 + $0x6] sm:$0x1]
      %v467 = vld [vmem:[%s419 + $0x7] sm:$0x1]
      %v468 = vpack.c.bf16 %v458, %v458
      %v469 = vld [vmem:[%s400] sm:$0xf]
      %v470 = vld [vmem:[%s400 + $0x4] sm:$0xf]
      %v471 = vld [vmem:[%s400 + $0x8] sm:$0xf]
      %v472 = vld [vmem:[%s400 + $0xc] sm:$0xf]
      %v473 = vlaneseq
      %v474 = vshrl.u32 %v473, 7
      %v475 = vsub.s32 0, %v474
      %v476 = vrot.slane %v460, %v475
      %v481 = vunpack.c.l.b16 %v469
      %v482 = vunpack.c.l.b16 %v470
      %v483 = vunpack.c.l.b16 %v471
      %v484 = vunpack.c.l.b16 %v472
      %v485 = vpack.c.b16 %v482, %v481
      %v486 = vpack.c.b16 %v484, %v483
      %vm489 = vcmask 261120
      %v491 = vsel %vm489, %v468, 0
      %493 = vmatprep.subr.bf16.mxu0 0
      %494 = vmatpush1.bf16.msra.mxu0 0
      %495 = vmatprep.subr.bf16.mxu0 0
      %496 = vmatpush1.bf16.msra.mxu0 0
      %497 = vmatprep.subr.bf16.mxu0 0
      %498 = vmatpush1.bf16.msra.mxu0 0
      %499 = vmatprep.subr.bf16.mxu0 0
      %500 = vmatpush1.bf16.msra.mxu0 0
      %501 = vmatprep.subr.bf16.mxu0 0
      %502 = vmatpush1.bf16.msra.mxu0 0
      %503 = vmatprep.subr.bf16.mxu0 0
      %504 = vmatpush1.bf16.msra.mxu0 0
      %505 = vmatprep.subr.bf16.mxu0 0
      %506 = vmatpush1.bf16.msra.mxu0 %v486
      %507 = vmatprep.subr.bf16.mxu0 0
      %508 = vmatpush1.bf16.msra.mxu0 %v485
      %509 = vmatprep.subr.bf16.mxu0 0
      %510 = vmatpush2.bf16.msra.mxu0 0
      %511 = vmatprep.subr.bf16.mxu0 0
      %512 = vmatpush2.bf16.msra.mxu0 0
      %513 = vmatprep.subr.bf16.mxu0 0
      %514 = vmatpush2.bf16.msra.mxu0 0
      %515 = vmatprep.subr.bf16.mxu0 0
      %516 = vmatpush2.bf16.msra.mxu0 0
      %517 = vmatprep.subr.bf16.mxu0 0
      %518 = vmatpush2.bf16.msra.mxu0 0
      %519 = vmatprep.subr.bf16.mxu0 0
      %520 = vmatpush2.bf16.msra.mxu0 0
      %521 = vmatprep.subr.bf16.mxu0 0
      %522 = vmatpush2.bf16.msra.mxu0 0
      %523 = vmatprep.subr.bf16.mxu0 0
      %524 = vmatpush2.bf16.msra.mxu0 0
      %525 = vmatprep.mubr.bf16.mxu0 0
      %526 = vmatmul.mubr.bf16.gmra.mxu0 %v491
      %v527 = vpop.f32.mrf.mxu0
      %v528 = vadd.f32 %v476, %v527
      %v529 = vpop.f32.mrf.mxu0
      %v530 = vpop.f32.mrf.mxu0
      %v531 = vpop.f32.mrf.mxu0
      %532 = vdwg.mxu0
      %v533 = vpack.c.bf16 %v528, %v528
      %535 = vrot.lane.b32.xlu0 %v533, 96
      %v536 = vpop.permute.xlu0 %535
      %vm537 = vcmask 64512
      %v539 = vsel %vm537, %v533, 0
      %v542 = vsel %vm537, %v536, 0
      %544 = vmatprep.subr.bf16.mxu0 0
      %545 = vmatpush1.bf16.xpose.msra.mxu0 0
      %546 = vmatprep.subr.bf16.mxu0 0
      %547 = vmatpush1.bf16.xpose.msra.mxu0 0
      %548 = vmatprep.subr.bf16.mxu0 0
      %549 = vmatpush1.bf16.xpose.msra.mxu0 0
      %550 = vmatprep.subr.bf16.mxu0 0
      %551 = vmatpush1.bf16.xpose.msra.mxu0 0
      %552 = vmatprep.subr.bf16.mxu0 0
      %553 = vmatpush1.bf16.xpose.msra.mxu0 0
      %554 = vmatprep.subr.bf16.mxu0 0
      %555 = vmatpush1.bf16.xpose.msra.mxu0 0
      %556 = vmatprep.subr.bf16.mxu0 0
      %557 = vmatpush1.bf16.xpose.msra.mxu0 0
      %558 = vmatprep.subr.bf16.mxu0 0
      %559 = vmatpush1.bf16.xpose.msra.mxu0 %v542
      %560 = vmatprep.subr.bf16.mxu0 0
      %561 = vmatpush2.bf16.xpose.msra.mxu0 0
      %562 = vmatprep.subr.bf16.mxu0 0
      %563 = vmatpush2.bf16.xpose.msra.mxu0 0
      %564 = vmatprep.subr.bf16.mxu0 0
      %565 = vmatpush2.bf16.xpose.msra.mxu0 0
      %566 = vmatprep.subr.bf16.mxu0 0
      %567 = vmatpush2.bf16.xpose.msra.mxu0 0
      %568 = vmatprep.subr.bf16.mxu0 0
      %569 = vmatpush2.bf16.xpose.msra.mxu0 0
      %570 = vmatprep.subr.bf16.mxu0 0
      %571 = vmatpush2.bf16.xpose.msra.mxu0 0
      %572 = vmatprep.subr.bf16.mxu0 0
      %573 = vmatpush2.bf16.xpose.msra.mxu0 0
      %574 = vmatprep.subr.bf16.mxu0 0
      %575 = vmatpush2.bf16.xpose.msra.mxu0 0
      %576 = vmatprep.mubr.bf16.mxu0 0
      %577 = vmatmul.mubr.bf16.gmra.mxu0 %v539
      %v578 = vpop.f32.mrf.mxu0
      %v579 = vadd.f32 0.0, %v578
      %v580 = vpop.f32.mrf.mxu0
      %v581 = vpop.f32.mrf.mxu0
      %v582 = vpop.f32.mrf.mxu0
      %583 = vdwg.mxu0
      %v584 = vmul.f32 %v579, 0.35355338
      %v586 = vlaneseq
      %v587 = vshrl.u32 %v586, 7
      %v588 = vsub.s32 0, %v587
      %v589 = vrot.slane %v459, %v588
      %v591 = vadd.f32 %v584, %v589
      %v592 = vsel %vm537, %v591, -inf
      %593 = vmax.xlane.f32.xlu0 %v592
      %v594 = vpop.xlane.xlu0 %593
      %v595 = vsub.f32 %v591, %v594
      %v596 = vmul.f32 %v595, 1.442695
      %v597 = vpow.pop %v596
      %v598 = vsel %vm537, %v597, 0.0
      %599 = vadd.xlane.f32.xlu0 %v598
      %v600 = vpop.xlane.xlu0 %599
      %v601 = vrcp.pop %v600
      %v602 = vmul.f32 %v597, %v601
      %v603 = vpack.c.bf16 %v602, %v602
      %604 = vrot.lane.b32.xlu0 %v533, 64
      %v605 = vpop.permute.xlu0 %604
      %v607 = vsel %vm537, %v603, 0
      %vm609 = vcmask 1043456
      %v611 = vsel %vm609, %v605, 0
      %613 = vmatprep.subr.bf16.mxu0 0
      %614 = vmatpush1.bf16.msra.mxu0 0
      %615 = vmatprep.subr.bf16.mxu0 0
      %616 = vmatpush1.bf16.msra.mxu0 0
      %617 = vmatprep.subr.bf16.mxu0 0
      %618 = vmatpush1.bf16.msra.mxu0 0
      %619 = vmatprep.subr.bf16.mxu0 0
      %620 = vmatpush1.bf16.msra.mxu0 0
      %621 = vmatprep.subr.bf16.mxu0 0
      %622 = vmatpush1.bf16.msra.mxu0 0
      %623 = vmatprep.subr.bf16.mxu0 0
      %624 = vmatpush1.bf16.msra.mxu0 0
      %625 = vmatprep.subr.bf16.mxu0 0
      %626 = vmatpush1.bf16.msra.mxu0 0
      %627 = vmatprep.subr.bf16.mxu0 0
      %628 = vmatpush1.bf16.msra.mxu0 %v611
      %629 = vmatprep.subr.bf16.mxu0 0
      %630 = vmatpush2.bf16.msra.mxu0 0
      %631 = vmatprep.subr.bf16.mxu0 0
      %632 = vmatpush2.bf16.msra.mxu0 0
      %633 = vmatprep.subr.bf16.mxu0 0
      %634 = vmatpush2.bf16.msra.mxu0 0
      %635 = vmatprep.subr.bf16.mxu0 0
      %636 = vmatpush2.bf16.msra.mxu0 0
      %637 = vmatprep.subr.bf16.mxu0 0
      %638 = vmatpush2.bf16.msra.mxu0 0
      %639 = vmatprep.subr.bf16.mxu0 0
      %640 = vmatpush2.bf16.msra.mxu0 0
      %641 = vmatprep.subr.bf16.mxu0 0
      %642 = vmatpush2.bf16.msra.mxu0 0
      %643 = vmatprep.subr.bf16.mxu0 0
      %644 = vmatpush2.bf16.msra.mxu0 0
      %645 = vmatprep.mubr.bf16.mxu0 0
      %646 = vmatmul.mubr.bf16.gmra.mxu0 %v607
      %v647 = vpop.f32.mrf.mxu0
      %v648 = vadd.f32 0.0, %v647
      %v649 = vpop.f32.mrf.mxu0
      %v650 = vpop.f32.mrf.mxu0
      %v651 = vpop.f32.mrf.mxu0
      %652 = vdwg.mxu0
      %v653 = vpack.c.bf16 %v648, %v648
      %v654 = vld [vmem:[%s405] sm:$0xf]
      %655 = vrot.lane.b32.xlu0 %v533, 120
      %v656 = vpop.permute.xlu0 %655
      %657 = vrot.lane.b32.xlu0 %v533, 88
      %v658 = vpop.permute.xlu0 %657
      %v660 = vsel %vm537, %v656, 0
      %v663 = vsel %vm537, %v658, 0
      %665 = vmatprep.subr.bf16.mxu0 0
      %666 = vmatpush1.bf16.xpose.msra.mxu0 0
      %667 = vmatprep.subr.bf16.mxu0 0
      %668 = vmatpush1.bf16.xpose.msra.mxu0 0
      %669 = vmatprep.subr.bf16.mxu0 0
      %670 = vmatpush1.bf16.xpose.msra.mxu0 0
      %671 = vmatprep.subr.bf16.mxu0 0
      %672 = vmatpush1.bf16.xpose.msra.mxu0 0
      %673 = vmatprep.subr.bf16.mxu0 0
      %674 = vmatpush1.bf16.xpose.msra.mxu0 0
      %675 = vmatprep.subr.bf16.mxu0 0
      %676 = vmatpush1.bf16.xpose.msra.mxu0 0
      %677 = vmatprep.subr.bf16.mxu0 0
      %678 = vmatpush1.bf16.xpose.msra.mxu0 0
      %679 = vmatprep.subr.bf16.mxu0 0
      %680 = vmatpush1.bf16.xpose.msra.mxu0 %v663
      %681 = vmatprep.subr.bf16.mxu0 0
      %682 = vmatpush2.bf16.xpose.msra.mxu0 0
      %683 = vmatprep.subr.bf16.mxu0 0
      %684 = vmatpush2.bf16.xpose.msra.mxu0 0
      %685 = vmatprep.subr.bf16.mxu0 0
      %686 = vmatpush2.bf16.xpose.msra.mxu0 0
      %687 = vmatprep.subr.bf16.mxu0 0
      %688 = vmatpush2.bf16.xpose.msra.mxu0 0
      %689 = vmatprep.subr.bf16.mxu0 0
      %690 = vmatpush2.bf16.xpose.msra.mxu0 0
      %691 = vmatprep.subr.bf16.mxu0 0
      %692 = vmatpush2.bf16.xpose.msra.mxu0 0
      %693 = vmatprep.subr.bf16.mxu0 0
      %694 = vmatpush2.bf16.xpose.msra.mxu0 0
      %695 = vmatprep.subr.bf16.mxu0 0
      %696 = vmatpush2.bf16.xpose.msra.mxu0 0
      %697 = vmatprep.mubr.bf16.mxu0 0
      %698 = vmatmul.mubr.bf16.gmra.mxu0 %v660
      %v699 = vpop.f32.mrf.mxu0
      %v700 = vadd.f32 0.0, %v699
      %v701 = vpop.f32.mrf.mxu0
      %v702 = vpop.f32.mrf.mxu0
      %v703 = vpop.f32.mrf.mxu0
      %704 = vdwg.mxu0
      %v705 = vmul.f32 %v700, 0.35355338
      %v706 = vadd.f32 %v705, %v589
      %v707 = vsel %vm537, %v706, -inf
      %708 = vmax.xlane.f32.xlu0 %v707
      %v709 = vpop.xlane.xlu0 %708
      %v710 = vsub.f32 %v706, %v709
      %v711 = vmul.f32 %v710, 1.442695
      %v712 = vpow.pop %v711
      %v713 = vsel %vm537, %v712, 0.0
      %714 = vadd.xlane.f32.xlu0 %v713
      %v715 = vpop.xlane.xlu0 %714
      %v716 = vrcp.pop %v715
      %v717 = vmul.f32 %v712, %v716
      %v718 = vpack.c.bf16 %v717, %v717
      %719 = vrot.lane.b32.xlu0 %v533, 56
      %v720 = vpop.permute.xlu0 %719
      %v722 = vsel %vm537, %v718, 0
      %v725 = vsel %vm609, %v720, 0
      %727 = vmatprep.subr.bf16.mxu0 0
      %728 = vmatpush1.bf16.msra.mxu0 0
      %729 = vmatprep.subr.bf16.mxu0 0
      %730 = vmatpush1.bf16.msra.mxu0 0
      %731 = vmatprep.subr.bf16.mxu0 0
      %732 = vmatpush1.bf16.msra.mxu0 0
      %733 = vmatprep.subr.bf16.mxu0 0
      %734 = vmatpush1.bf16.msra.mxu0 0
      %735 = vmatprep.subr.bf16.mxu0 0
      %736 = vmatpush1.bf16.msra.mxu0 0
      %737 = vmatprep.subr.bf16.mxu0 0
      %738 = vmatpush1.bf16.msra.mxu0 0
      %739 = vmatprep.subr.bf16.mxu0 0
      %740 = vmatpush1.bf16.msra.mxu0 0
      %741 = vmatprep.subr.bf16.mxu0 0
      %742 = vmatpush1.bf16.msra.mxu0 %v725
      %743 = vmatprep.subr.bf16.mxu0 0
      %744 = vmatpush2.bf16.msra.mxu0 0
      %745 = vmatprep.subr.bf16.mxu0 0
      %746 = vmatpush2.bf16.msra.mxu0 0
      %747 = vmatprep.subr.bf16.mxu0 0
      %748 = vmatpush2.bf16.msra.mxu0 0
      %749 = vmatprep.subr.bf16.mxu0 0
      %750 = vmatpush2.bf16.msra.mxu0 0
      %751 = vmatprep.subr.bf16.mxu0 0
      %752 = vmatpush2.bf16.msra.mxu0 0
      %753 = vmatprep.subr.bf16.mxu0 0
      %754 = vmatpush2.bf16.msra.mxu0 0
      %755 = vmatprep.subr.bf16.mxu0 0
      %756 = vmatpush2.bf16.msra.mxu0 0
      %757 = vmatprep.subr.bf16.mxu0 0
      %758 = vmatpush2.bf16.msra.mxu0 0
      %759 = vmatprep.mubr.bf16.mxu0 0
      %760 = vmatmul.mubr.bf16.gmra.mxu0 %v722
      %v761 = vpop.f32.mrf.mxu0
      %v762 = vadd.f32 0.0, %v761
      %v763 = vpop.f32.mrf.mxu0
      %v764 = vpop.f32.mrf.mxu0
      %v765 = vpop.f32.mrf.mxu0
      %766 = vdwg.mxu0
      %v767 = vpack.c.bf16 %v762, %v762
      %v768 = vld [vmem:[%s405 + $0x4] sm:$0xf]
      %v770 = vsel %vm537, %v767, 0
      %v773 = vsel %vm609, %v768, 0
      %775 = vmatprep.subr.bf16.mxu0 0
      %776 = vmatpush1.bf16.msra.mxu0 0
      %777 = vmatprep.subr.bf16.mxu0 0
      %778 = vmatpush1.bf16.msra.mxu0 0
      %779 = vmatprep.subr.bf16.mxu0 0
      %780 = vmatpush1.bf16.msra.mxu0 0
      %781 = vmatprep.subr.bf16.mxu0 0
      %782 = vmatpush1.bf16.msra.mxu0 0
      %783 = vmatprep.subr.bf16.mxu0 0
      %784 = vmatpush1.bf16.msra.mxu0 0
      %785 = vmatprep.subr.bf16.mxu0 0
      %786 = vmatpush1.bf16.msra.mxu0 0
      %787 = vmatprep.subr.bf16.mxu0 0
      %788 = vmatpush1.bf16.msra.mxu0 0
      %789 = vmatprep.subr.bf16.mxu0 0
      %790 = vmatpush1.bf16.msra.mxu0 %v773
      %791 = vmatprep.subr.bf16.mxu0 0
      %792 = vmatpush2.bf16.msra.mxu0 0
      %793 = vmatprep.subr.bf16.mxu0 0
      %794 = vmatpush2.bf16.msra.mxu0 0
      %795 = vmatprep.subr.bf16.mxu0 0
      %796 = vmatpush2.bf16.msra.mxu0 0
      %797 = vmatprep.subr.bf16.mxu0 0
      %798 = vmatpush2.bf16.msra.mxu0 0
      %799 = vmatprep.subr.bf16.mxu0 0
      %800 = vmatpush2.bf16.msra.mxu0 0
      %801 = vmatprep.subr.bf16.mxu0 0
      %802 = vmatpush2.bf16.msra.mxu0 0
      %803 = vmatprep.subr.bf16.mxu0 0
      %804 = vmatpush2.bf16.msra.mxu0 0
      %805 = vmatprep.subr.bf16.mxu0 0
      %806 = vmatpush2.bf16.msra.mxu0 0
      %807 = vmatprep.mubr.bf16.mxu0 0
      %808 = vmatmul.mubr.bf16.gmra.mxu0 %v770
      %v809 = vpop.f32.mrf.mxu0
      %v810 = vadd.f32 0.0, %v809
      %v811 = vpop.f32.mrf.mxu0
      %v812 = vpop.f32.mrf.mxu0
      %v813 = vpop.f32.mrf.mxu0
      %814 = vdwg.mxu0
      %v816 = vsel %vm537, %v653, 0
      %v819 = vsel %vm609, %v654, 0
      %821 = vmatprep.subr.bf16.mxu0 0
      %822 = vmatpush1.bf16.msra.mxu0 0
      %823 = vmatprep.subr.bf16.mxu0 0
      %824 = vmatpush1.bf16.msra.mxu0 0
      %825 = vmatprep.subr.bf16.mxu0 0
      %826 = vmatpush1.bf16.msra.mxu0 0
      %827 = vmatprep.subr.bf16.mxu0 0
      %828 = vmatpush1.bf16.msra.mxu0 0
      %829 = vmatprep.subr.bf16.mxu0 0
      %830 = vmatpush1.bf16.msra.mxu0 0
      %831 = vmatprep.subr.bf16.mxu0 0
      %832 = vmatpush1.bf16.msra.mxu0 0
      %833 = vmatprep.subr.bf16.mxu0 0
      %834 = vmatpush1.bf16.msra.mxu0 0
      %835 = vmatprep.subr.bf16.mxu0 0
      %836 = vmatpush1.bf16.msra.mxu0 %v819
      %837 = vmatprep.subr.bf16.mxu0 0
      %838 = vmatpush2.bf16.msra.mxu0 0
      %839 = vmatprep.subr.bf16.mxu0 0
      %840 = vmatpush2.bf16.msra.mxu0 0
      %841 = vmatprep.subr.bf16.mxu0 0
      %842 = vmatpush2.bf16.msra.mxu0 0
      %843 = vmatprep.subr.bf16.mxu0 0
      %844 = vmatpush2.bf16.msra.mxu0 0
      %845 = vmatprep.subr.bf16.mxu0 0
      %846 = vmatpush2.bf16.msra.mxu0 0
      %847 = vmatprep.subr.bf16.mxu0 0
      %848 = vmatpush2.bf16.msra.mxu0 0
      %849 = vmatprep.subr.bf16.mxu0 0
      %850 = vmatpush2.bf16.msra.mxu0 0
      %851 = vmatprep.subr.bf16.mxu0 0
      %852 = vmatpush2.bf16.msra.mxu0 0
      %853 = vmatprep.mubr.bf16.mxu0 0
      %854 = vmatmul.mubr.bf16.gmra.mxu0 %v816
      %v855 = vpop.f32.mrf.mxu0
      %v856 = vadd.f32 %v810, %v855
      %v857 = vpop.f32.mrf.mxu0
      %v858 = vpop.f32.mrf.mxu0
      %v859 = vpop.f32.mrf.mxu0
      %860 = vdwg.mxu0
      %861 = vrot.lane.b32.xlu0 %v533, 112
      %v862 = vpop.permute.xlu0 %861
      %863 = vrot.lane.b32.xlu0 %v533, 80
      %v864 = vpop.permute.xlu0 %863
      %v866 = vsel %vm537, %v862, 0
      %v869 = vsel %vm537, %v864, 0
      %871 = vmatprep.subr.bf16.mxu0 0
      %872 = vmatpush1.bf16.xpose.msra.mxu0 0
      %873 = vmatprep.subr.bf16.mxu0 0
      %874 = vmatpush1.bf16.xpose.msra.mxu0 0
      %875 = vmatprep.subr.bf16.mxu0 0
      %876 = vmatpush1.bf16.xpose.msra.mxu0 0
      %877 = vmatprep.subr.bf16.mxu0 0
      %878 = vmatpush1.bf16.xpose.msra.mxu0 0
      %879 = vmatprep.subr.bf16.mxu0 0
      %880 = vmatpush1.bf16.xpose.msra.mxu0 0
      %881 = vmatprep.subr.bf16.mxu0 0
      %882 = vmatpush1.bf16.xpose.msra.mxu0 0
      %883 = vmatprep.subr.bf16.mxu0 0
      %884 = vmatpush1.bf16.xpose.msra.mxu0 0
      %885 = vmatprep.subr.bf16.mxu0 0
      %886 = vmatpush1.bf16.xpose.msra.mxu0 %v869
      %887 = vmatprep.subr.bf16.mxu0 0
      %888 = vmatpush2.bf16.xpose.msra.mxu0 0
      %889 = vmatprep.subr.bf16.mxu0 0
      %890 = vmatpush2.bf16.xpose.msra.mxu0 0
      %891 = vmatprep.subr.bf16.mxu0 0
      %892 = vmatpush2.bf16.xpose.msra.mxu0 0
      %893 = vmatprep.subr.bf16.mxu0 0
      %894 = vmatpush2.bf16.xpose.msra.mxu0 0
      %895 = vmatprep.subr.bf16.mxu0 0
      %896 = vmatpush2.bf16.xpose.msra.mxu0 0
      %897 = vmatprep.subr.bf16.mxu0 0
      %898 = vmatpush2.bf16.xpose.msra.mxu0 0
      %899 = vmatprep.subr.bf16.mxu0 0
      %900 = vmatpush2.bf16.xpose.msra.mxu0 0
      %901 = vmatprep.subr.bf16.mxu0 0
      %902 = vmatpush2.bf16.xpose.msra.mxu0 0
      %903 = vmatprep.mubr.bf16.mxu0 0
      %904 = vmatmul.mubr.bf16.gmra.mxu0 %v866
      %v905 = vpop.f32.mrf.mxu0
      %v906 = vadd.f32 0.0, %v905
      %v907 = vpop.f32.mrf.mxu0
      %v908 = vpop.f32.mrf.mxu0
      %v909 = vpop.f32.mrf.mxu0
      %910 = vdwg.mxu0
      %v911 = vmul.f32 %v906, 0.35355338
      %v912 = vadd.f32 %v911, %v589
      %v913 = vsel %vm537, %v912, -inf
      %914 = vmax.xlane.f32.xlu0 %v913
      %v915 = vpop.xlane.xlu0 %914
      %v916 = vsub.f32 %v912, %v915
      %v917 = vmul.f32 %v916, 1.442695
      %v918 = vpow.pop %v917
      %v919 = vsel %vm537, %v918, 0.0
      %920 = vadd.xlane.f32.xlu0 %v919
      %v921 = vpop.xlane.xlu0 %920
      %v922 = vrcp.pop %v921
      %v923 = vmul.f32 %v918, %v922
      %v924 = vpack.c.bf16 %v923, %v923
      %925 = vrot.lane.b32.xlu0 %v533, 48
      %v926 = vpop.permute.xlu0 %925
      %v928 = vsel %vm537, %v924, 0
      %v931 = vsel %vm609, %v926, 0
      %933 = vmatprep.subr.bf16.mxu0 0
      %934 = vmatpush1.bf16.msra.mxu0 0
      %935 = vmatprep.subr.bf16.mxu0 0
      %936 = vmatpush1.bf16.msra.mxu0 0
      %937 = vmatprep.subr.bf16.mxu0 0
      %938 = vmatpush1.bf16.msra.mxu0 0
      %939 = vmatprep.subr.bf16.mxu0 0
      %940 = vmatpush1.bf16.msra.mxu0 0
      %941 = vmatprep.subr.bf16.mxu0 0
      %942 = vmatpush1.bf16.msra.mxu0 0
      %943 = vmatprep.subr.bf16.mxu0 0
      %944 = vmatpush1.bf16.msra.mxu0 0
      %945 = vmatprep.subr.bf16.mxu0 0
      %946 = vmatpush1.bf16.msra.mxu0 0
      %947 = vmatprep.subr.bf16.mxu0 0
      %948 = vmatpush1.bf16.msra.mxu0 %v931
      %949 = vmatprep.subr.bf16.mxu0 0
      %950 = vmatpush2.bf16.msra.mxu0 0
      %951 = vmatprep.subr.bf16.mxu0 0
      %952 = vmatpush2.bf16.msra.mxu0 0
      %953 = vmatprep.subr.bf16.mxu0 0
      %954 = vmatpush2.bf16.msra.mxu0 0
      %955 = vmatprep.subr.bf16.mxu0 0
      %956 = vmatpush2.bf16.msra.mxu0 0
      %957 = vmatprep.subr.bf16.mxu0 0
      %958 = vmatpush2.bf16.msra.mxu0 0
      %959 = vmatprep.subr.bf16.mxu0 0
      %960 = vmatpush2.bf16.msra.mxu0 0
      %961 = vmatprep.subr.bf16.mxu0 0
      %962 = vmatpush2.bf16.msra.mxu0 0
      %963 = vmatprep.subr.bf16.mxu0 0
      %964 = vmatpush2.bf16.msra.mxu0 0
      %965 = vmatprep.mubr.bf16.mxu0 0
      %966 = vmatmul.mubr.bf16.gmra.mxu0 %v928
      %v967 = vpop.f32.mrf.mxu0
      %v968 = vadd.f32 0.0, %v967
      %v969 = vpop.f32.mrf.mxu0
      %v970 = vpop.f32.mrf.mxu0
      %v971 = vpop.f32.mrf.mxu0
      %972 = vdwg.mxu0
      %v973 = vpack.c.bf16 %v968, %v968
      %v974 = vld [vmem:[%s405 + $0x8] sm:$0xf]
      %v976 = vsel %vm537, %v973, 0
      %v979 = vsel %vm609, %v974, 0
      %981 = vmatprep.subr.bf16.mxu0 0
      %982 = vmatpush1.bf16.msra.mxu0 0
      %983 = vmatprep.subr.bf16.mxu0 0
      %984 = vmatpush1.bf16.msra.mxu0 0
      %985 = vmatprep.subr.bf16.mxu0 0
      %986 = vmatpush1.bf16.msra.mxu0 0
      %987 = vmatprep.subr.bf16.mxu0 0
      %988 = vmatpush1.bf16.msra.mxu0 0
      %989 = vmatprep.subr.bf16.mxu0 0
      %990 = vmatpush1.bf16.msra.mxu0 0
      %991 = vmatprep.subr.bf16.mxu0 0
      %992 = vmatpush1.bf16.msra.mxu0 0
      %993 = vmatprep.subr.bf16.mxu0 0
      %994 = vmatpush1.bf16.msra.mxu0 0
      %995 = vmatprep.subr.bf16.mxu0 0
      %996 = vmatpush1.bf16.msra.mxu0 %v979
      %997 = vmatprep.subr.bf16.mxu0 0
      %998 = vmatpush2.bf16.msra.mxu0 0
      %999 = vmatprep.subr.bf16.mxu0 0
      %1000 = vmatpush2.bf16.msra.mxu0 0
      %1001 = vmatprep.subr.bf16.mxu0 0
      %1002 = vmatpush2.bf16.msra.mxu0 0
      %1003 = vmatprep.subr.bf16.mxu0 0
      %1004 = vmatpush2.bf16.msra.mxu0 0
      %1005 = vmatprep.subr.bf16.mxu0 0
      %1006 = vmatpush2.bf16.msra.mxu0 0
      %1007 = vmatprep.subr.bf16.mxu0 0
      %1008 = vmatpush2.bf16.msra.mxu0 0
      %1009 = vmatprep.subr.bf16.mxu0 0
      %1010 = vmatpush2.bf16.msra.mxu0 0
      %1011 = vmatprep.subr.bf16.mxu0 0
      %1012 = vmatpush2.bf16.msra.mxu0 0
      %1013 = vmatprep.mubr.bf16.mxu0 0
      %1014 = vmatmul.mubr.bf16.gmra.mxu0 %v976
      %v1015 = vpop.f32.mrf.mxu0
      %v1016 = vadd.f32 0.0, %v1015
      %v1017 = vpop.f32.mrf.mxu0
      %v1018 = vpop.f32.mrf.mxu0
      %v1019 = vpop.f32.mrf.mxu0
      %1020 = vdwg.mxu0
      %v1021 = vadd.f32 %v856, %v1016
      %1022 = vrot.lane.b32.xlu0 %v533, 104
      %v1023 = vpop.permute.xlu0 %1022
      %1024 = vrot.lane.b32.xlu0 %v533, 72
      %v1025 = vpop.permute.xlu0 %1024
      %v1027 = vsel %vm537, %v1023, 0
      %v1030 = vsel %vm537, %v1025, 0
      %1032 = vmatprep.subr.bf16.mxu0 0
      %1033 = vmatpush1.bf16.xpose.msra.mxu0 0
      %1034 = vmatprep.subr.bf16.mxu0 0
      %1035 = vmatpush1.bf16.xpose.msra.mxu0 0
      %1036 = vmatprep.subr.bf16.mxu0 0
      %1037 = vmatpush1.bf16.xpose.msra.mxu0 0
      %1038 = vmatprep.subr.bf16.mxu0 0
      %1039 = vmatpush1.bf16.xpose.msra.mxu0 0
      %1040 = vmatprep.subr.bf16.mxu0 0
      %1041 = vmatpush1.bf16.xpose.msra.mxu0 0
      %1042 = vmatprep.subr.bf16.mxu0 0
      %1043 = vmatpush1.bf16.xpose.msra.mxu0 0
      %1044 = vmatprep.subr.bf16.mxu0 0
      %1045 = vmatpush1.bf16.xpose.msra.mxu0 0
      %1046 = vmatprep.subr.bf16.mxu0 0
      %1047 = vmatpush1.bf16.xpose.msra.mxu0 %v1030
      %1048 = vmatprep.subr.bf16.mxu0 0
      %1049 = vmatpush2.bf16.xpose.msra.mxu0 0
      %1050 = vmatprep.subr.bf16.mxu0 0
      %1051 = vmatpush2.bf16.xpose.msra.mxu0 0
      %1052 = vmatprep.subr.bf16.mxu0 0
      %1053 = vmatpush2.bf16.xpose.msra.mxu0 0
      %1054 = vmatprep.subr.bf16.mxu0 0
      %1055 = vmatpush2.bf16.xpose.msra.mxu0 0
      %1056 = vmatprep.subr.bf16.mxu0 0
      %1057 = vmatpush2.bf16.xpose.msra.mxu0 0
      %1058 = vmatprep.subr.bf16.mxu0 0
      %1059 = vmatpush2.bf16.xpose.msra.mxu0 0
      %1060 = vmatprep.subr.bf16.mxu0 0
      %1061 = vmatpush2.bf16.xpose.msra.mxu0 0
      %1062 = vmatprep.subr.bf16.mxu0 0
      %1063 = vmatpush2.bf16.xpose.msra.mxu0 0
      %1064 = vmatprep.mubr.bf16.mxu0 0
      %1065 = vmatmul.mubr.bf16.gmra.mxu0 %v1027
      %v1066 = vpop.f32.mrf.mxu0
      %v1067 = vadd.f32 0.0, %v1066
      %v1068 = vpop.f32.mrf.mxu0
      %v1069 = vpop.f32.mrf.mxu0
      %v1070 = vpop.f32.mrf.mxu0
      %1071 = vdwg.mxu0
      %v1072 = vmul.f32 %v1067, 0.35355338
      %v1073 = vadd.f32 %v1072, %v589
      %v1074 = vsel %vm537, %v1073, -inf
      %1075 = vmax.xlane.f32.xlu0 %v1074
      %v1076 = vpop.xlane.xlu0 %1075
      %v1077 = vsub.f32 %v1073, %v1076
      %v1078 = vmul.f32 %v1077, 1.442695
      %v1079 = vpow.pop %v1078
      %v1080 = vsel %vm537, %v1079, 0.0
      %1081 = vadd.xlane.f32.xlu0 %v1080
      %v1082 = vpop.xlane.xlu0 %1081
      %v1083 = vrcp.pop %v1082
      %v1084 = vmul.f32 %v1079, %v1083
      %v1085 = vpack.c.bf16 %v1084, %v1084
      %1086 = vrot.lane.b32.xlu0 %v533, 40
      %v1087 = vpop.permute.xlu0 %1086
      %v1089 = vsel %vm537, %v1085, 0
      %v1092 = vsel %vm609, %v1087, 0
      %1094 = vmatprep.subr.bf16.mxu0 0
      %1095 = vmatpush1.bf16.msra.mxu0 0
      %1096 = vmatprep.subr.bf16.mxu0 0
      %1097 = vmatpush1.bf16.msra.mxu0 0
      %1098 = vmatprep.subr.bf16.mxu0 0
      %1099 = vmatpush1.bf16.msra.mxu0 0
      %1100 = vmatprep.subr.bf16.mxu0 0
      %1101 = vmatpush1.bf16.msra.mxu0 0
      %1102 = vmatprep.subr.bf16.mxu0 0
      %1103 = vmatpush1.bf16.msra.mxu0 0
      %1104 = vmatprep.subr.bf16.mxu0 0
      %1105 = vmatpush1.bf16.msra.mxu0 0
      %1106 = vmatprep.subr.bf16.mxu0 0
      %1107 = vmatpush1.bf16.msra.mxu0 0
      %1108 = vmatprep.subr.bf16.mxu0 0
      %1109 = vmatpush1.bf16.msra.mxu0 %v1092
      %1110 = vmatprep.subr.bf16.mxu0 0
      %1111 = vmatpush2.bf16.msra.mxu0 0
      %1112 = vmatprep.subr.bf16.mxu0 0
      %1113 = vmatpush2.bf16.msra.mxu0 0
      %1114 = vmatprep.subr.bf16.mxu0 0
      %1115 = vmatpush2.bf16.msra.mxu0 0
      %1116 = vmatprep.subr.bf16.mxu0 0
      %1117 = vmatpush2.bf16.msra.mxu0 0
      %1118 = vmatprep.subr.bf16.mxu0 0
      %1119 = vmatpush2.bf16.msra.mxu0 0
      %1120 = vmatprep.subr.bf16.mxu0 0
      %1121 = vmatpush2.bf16.msra.mxu0 0
      %1122 = vmatprep.subr.bf16.mxu0 0
      %1123 = vmatpush2.bf16.msra.mxu0 0
      %1124 = vmatprep.subr.bf16.mxu0 0
      %1125 = vmatpush2.bf16.msra.mxu0 0
      %1126 = vmatprep.mubr.bf16.mxu0 0
      %1127 = vmatmul.mubr.bf16.gmra.mxu0 %v1089
      %v1128 = vpop.f32.mrf.mxu0
      %v1129 = vadd.f32 0.0, %v1128
      %v1130 = vpop.f32.mrf.mxu0
      %v1131 = vpop.f32.mrf.mxu0
      %v1132 = vpop.f32.mrf.mxu0
      %1133 = vdwg.mxu0
      %v1134 = vpack.c.bf16 %v1129, %v1129
      %v1135 = vld [vmem:[%s405 + $0xc] sm:$0xf]
      %v1137 = vsel %vm537, %v1134, 0
      %v1140 = vsel %vm609, %v1135, 0
      %1142 = vmatprep.subr.bf16.mxu0 0
      %1143 = vmatpush1.bf16.msra.mxu0 0
      %1144 = vmatprep.subr.bf16.mxu0 0
      %1145 = vmatpush1.bf16.msra.mxu0 0
      %1146 = vmatprep.subr.bf16.mxu0 0
      %1147 = vmatpush1.bf16.msra.mxu0 0
      %1148 = vmatprep.subr.bf16.mxu0 0
      %1149 = vmatpush1.bf16.msra.mxu0 0
      %1150 = vmatprep.subr.bf16.mxu0 0
      %1151 = vmatpush1.bf16.msra.mxu0 0
      %1152 = vmatprep.subr.bf16.mxu0 0
      %1153 = vmatpush1.bf16.msra.mxu0 0
      %1154 = vmatprep.subr.bf16.mxu0 0
      %1155 = vmatpush1.bf16.msra.mxu0 0
      %1156 = vmatprep.subr.bf16.mxu0 0
      %1157 = vmatpush1.bf16.msra.mxu0 %v1140
      %1158 = vmatprep.subr.bf16.mxu0 0
      %1159 = vmatpush2.bf16.msra.mxu0 0
      %1160 = vmatprep.subr.bf16.mxu0 0
      %1161 = vmatpush2.bf16.msra.mxu0 0
      %1162 = vmatprep.subr.bf16.mxu0 0
      %1163 = vmatpush2.bf16.msra.mxu0 0
      %1164 = vmatprep.subr.bf16.mxu0 0
      %1165 = vmatpush2.bf16.msra.mxu0 0
      %1166 = vmatprep.subr.bf16.mxu0 0
      %1167 = vmatpush2.bf16.msra.mxu0 0
      %1168 = vmatprep.subr.bf16.mxu0 0
      %1169 = vmatpush2.bf16.msra.mxu0 0
      %1170 = vmatprep.subr.bf16.mxu0 0
      %1171 = vmatpush2.bf16.msra.mxu0 0
      %1172 = vmatprep.subr.bf16.mxu0 0
      %1173 = vmatpush2.bf16.msra.mxu0 0
      %1174 = vmatprep.mubr.bf16.mxu0 0
      %1175 = vmatmul.mubr.bf16.gmra.mxu0 %v1137
      %v1176 = vpop.f32.mrf.mxu0
      %v1177 = vadd.f32 0.0, %v1176
      %v1178 = vpop.f32.mrf.mxu0
      %v1179 = vpop.f32.mrf.mxu0
      %v1180 = vpop.f32.mrf.mxu0
      %1181 = vdwg.mxu0
      %v1182 = vadd.f32 %v1021, %v1177
      %v1183 = vlaneseq
      %v1184 = vshrl.u32 %v1183, 7
      %v1185 = vsub.s32 0, %v1184
      %v1186 = vrot.slane %v461, %v1185
      %v1187 = vadd.f32 %v1182, %v1186
      %v1188 = vadd.f32 %v1187, %v458
      %v1189 = vsel %vm489, %v1188, 0.0
      %1190 = vadd.xlane.f32.xlu0 %v1189
      %v1191 = vpop.xlane.xlu0 %1190
      %v1192 = vrcp.pop 32.0
      %v1193 = vmul.f32 %v1191, %v1192
      %v1194 = vsub.f32 %v1188, %v1193
      %v1195 = vmul.f32 %v1194, %v1194
      %v1196 = vsel %vm489, %v1195, 0.0
      %1197 = vadd.xlane.f32.xlu0 %v1196
      %v1198 = vpop.xlane.xlu0 %1197
      %v1199 = vmul.f32 %v1198, %v1192
      %v1200 = vadd.f32 %v1199, 1e-12
      %v1201 = vrsqrt.pop %v1200
      %v1202 = vmul.f32 %v1194, %v1201
      %v1203 = vlaneseq
      %v1204 = vshrl.u32 %v1203, 7
      %v1205 = vsub.s32 0, %v1204
      %v1206 = vrot.slane %v462, %v1205
      %v1207 = vmul.f32 %v1202, %v1206
      %v1208 = vlaneseq
      %v1209 = vshrl.u32 %v1208, 7
      %v1210 = vsub.s32 0, %v1209
      %v1211 = vrot.slane %v463, %v1210
      %v1212 = vadd.f32 %v1207, %v1211
      %v1213 = vpack.c.bf16 %v1212, %v1212
      %v1214 = vld [vmem:[%s410] sm:$0xf]
      %v1215 = vld [vmem:[%s410 + $0x4] sm:$0xf]
      %v1216 = vld [vmem:[%s410 + $0x8] sm:$0xf]
      %v1217 = vld [vmem:[%s410 + $0xc] sm:$0xf]
      %v1218 = vlaneseq
      %v1219 = vshrl.u32 %v1218, 7
      %v1220 = vsub.s32 0, %v1219
      %v1221 = vrot.slane %v464, %v1220
      %v1226 = vunpack.c.l.b16 %v1214
      %v1227 = vunpack.c.l.b16 %v1215
      %v1228 = vunpack.c.l.b16 %v1216
      %v1229 = vunpack.c.l.b16 %v1217
      %v1230 = vpack.c.b16 %v1227, %v1226
      %v1231 = vpack.c.b16 %v1229, %v1228
      %v1235 = vsel %vm489, %v1213, 0
      %1237 = vmatprep.subr.bf16.mxu0 0
      %1238 = vmatpush1.bf16.msra.mxu0 0
      %1239 = vmatprep.subr.bf16.mxu0 0
      %1240 = vmatpush1.bf16.msra.mxu0 0
      %1241 = vmatprep.subr.bf16.mxu0 0
      %1242 = vmatpush1.bf16.msra.mxu0 0
      %1243 = vmatprep.subr.bf16.mxu0 0
      %1244 = vmatpush1.bf16.msra.mxu0 0
      %1245 = vmatprep.subr.bf16.mxu0 0
      %1246 = vmatpush1.bf16.msra.mxu0 0
      %1247 = vmatprep.subr.bf16.mxu0 0
      %1248 = vmatpush1.bf16.msra.mxu0 0
      %1249 = vmatprep.subr.bf16.mxu0 0
      %1250 = vmatpush1.bf16.msra.mxu0 %v1231
      %1251 = vmatprep.subr.bf16.mxu0 0
      %1252 = vmatpush1.bf16.msra.mxu0 %v1230
      %1253 = vmatprep.subr.bf16.mxu0 0
      %1254 = vmatpush2.bf16.msra.mxu0 0
      %1255 = vmatprep.subr.bf16.mxu0 0
      %1256 = vmatpush2.bf16.msra.mxu0 0
      %1257 = vmatprep.subr.bf16.mxu0 0
      %1258 = vmatpush2.bf16.msra.mxu0 0
      %1259 = vmatprep.subr.bf16.mxu0 0
      %1260 = vmatpush2.bf16.msra.mxu0 0
      %1261 = vmatprep.subr.bf16.mxu0 0
      %1262 = vmatpush2.bf16.msra.mxu0 0
      %1263 = vmatprep.subr.bf16.mxu0 0
      %1264 = vmatpush2.bf16.msra.mxu0 0
      %1265 = vmatprep.subr.bf16.mxu0 0
      %1266 = vmatpush2.bf16.msra.mxu0 0
      %1267 = vmatprep.subr.bf16.mxu0 0
      %1268 = vmatpush2.bf16.msra.mxu0 0
      %1269 = vmatprep.mubr.bf16.mxu0 0
      %1270 = vmatmul.mubr.bf16.gmra.mxu0 %v1235
      %v1271 = vpop.f32.mrf.mxu0
      %v1272 = vadd.f32 %v1221, %v1271
      %v1273 = vpop.f32.mrf.mxu0
      %v1274 = vpop.f32.mrf.mxu0
      %v1275 = vpop.f32.mrf.mxu0
      %1276 = vdwg.mxu0
      %v1277 = vmul.f32 %v1272, 0.5
      %v1278 = vmul.f32 %v1272, 0.044715
      %v1279 = vmul.f32 %v1278, %v1272
      %v1280 = vmul.f32 %v1279, %v1272
      %v1281 = vadd.f32 %v1272, %v1280
      %v1282 = vmul.f32 %v1281, 0.7978846
      %v1283 = vtanh.pop %v1282
      %v1284 = vadd.f32 %v1283, 1.0
      %v1285 = vmul.f32 %v1277, %v1284
      %v1286 = vpack.c.bf16 %v1285, %v1285
      %v1287 = vld [vmem:[%s415] sm:$0xf]
      %v1288 = vld [vmem:[%s415 + $0x4] sm:$0xf]
      %v1289 = vld [vmem:[%s415 + $0x8] sm:$0xf]
      %v1290 = vld [vmem:[%s415 + $0xc] sm:$0xf]
      %v1291 = vld [vmem:[%s415 + $0x10] sm:$0xf]
      %v1292 = vld [vmem:[%s415 + $0x14] sm:$0xf]
      %v1293 = vld [vmem:[%s415 + $0x18] sm:$0xf]
      %v1294 = vld [vmem:[%s415 + $0x1c] sm:$0xf]
      %v1295 = vlaneseq
      %v1296 = vshrl.u32 %v1295, 7
      %v1297 = vsub.s32 0, %v1296
      %v1298 = vrot.slane %v465, %v1297
      %v1307 = vunpack.c.l.b16 %v1287
      %v1308 = vunpack.c.l.b16 %v1288
      %v1309 = vunpack.c.l.b16 %v1289
      %v1310 = vunpack.c.l.b16 %v1290
      %v1311 = vunpack.c.l.b16 %v1291
      %v1312 = vunpack.c.l.b16 %v1292
      %v1313 = vunpack.c.l.b16 %v1293
      %v1314 = vunpack.c.l.b16 %v1294
      %v1315 = vpack.c.b16 %v1308, %v1307
      %v1316 = vpack.c.b16 %v1310, %v1309
      %v1317 = vpack.c.b16 %v1312, %v1311
      %v1318 = vpack.c.b16 %v1314, %v1313
      %vm1323 = vcmask 523264
      %v1325 = vsel %vm1323, %v1286, 0
      %1327 = vmatprep.subr.bf16.mxu0 0
      %1328 = vmatpush1.bf16.msra.mxu0 0
      %1329 = vmatprep.subr.bf16.mxu0 0
      %1330 = vmatpush1.bf16.msra.mxu0 0
      %1331 = vmatprep.subr.bf16.mxu0 0
      %1332 = vmatpush1.bf16.msra.mxu0 0
      %1333 = vmatprep.subr.bf16.mxu0 0
      %1334 = vmatpush1.bf16.msra.mxu0 0
      %1335 = vmatprep.subr.bf16.mxu0 0
      %1336 = vmatpush1.bf16.msra.mxu0 %v1318
      %1337 = vmatprep.subr.bf16.mxu0 0
      %1338 = vmatpush1.bf16.msra.mxu0 %v1317
      %1339 = vmatprep.subr.bf16.mxu0 0
      %1340 = vmatpush1.bf16.msra.mxu0 %v1316
      %1341 = vmatprep.subr.bf16.mxu0 0
      %1342 = vmatpush1.bf16.msra.mxu0 %v1315
      %1343 = vmatprep.subr.bf16.mxu0 0
      %1344 = vmatpush2.bf16.msra.mxu0 0
      %1345 = vmatprep.subr.bf16.mxu0 0
      %1346 = vmatpush2.bf16.msra.mxu0 0
      %1347 = vmatprep.subr.bf16.mxu0 0
      %1348 = vmatpush2.bf16.msra.mxu0 0
      %1349 = vmatprep.subr.bf16.mxu0 0
      %1350 = vmatpush2.bf16.msra.mxu0 0
      %1351 = vmatprep.subr.bf16.mxu0 0
      %1352 = vmatpush2.bf16.msra.mxu0 0
      %1353 = vmatprep.subr.bf16.mxu0 0
      %1354 = vmatpush2.bf16.msra.mxu0 0
      %1355 = vmatprep.subr.bf16.mxu0 0
      %1356 = vmatpush2.bf16.msra.mxu0 0
      %1357 = vmatprep.subr.bf16.mxu0 0
      %1358 = vmatpush2.bf16.msra.mxu0 0
      %1359 = vmatprep.mubr.bf16.mxu0 0
      %1360 = vmatmul.mubr.bf16.gmra.mxu0 %v1325
      %v1361 = vpop.f32.mrf.mxu0
      %v1362 = vadd.f32 %v1298, %v1361
      %v1363 = vpop.f32.mrf.mxu0
      %v1364 = vpop.f32.mrf.mxu0
      %v1365 = vpop.f32.mrf.mxu0
      %1366 = vdwg.mxu0
      %v1367 = vadd.f32 %v1362, %v1212
      %v1368 = vsel %vm489, %v1367, 0.0
      %1369 = vadd.xlane.f32.xlu0 %v1368
      %v1370 = vpop.xlane.xlu0 %1369
      %v1371 = vmul.f32 %v1370, %v1192
      %v1372 = vsub.f32 %v1367, %v1371
      %v1373 = vmul.f32 %v1372, %v1372
      %v1374 = vsel %vm489, %v1373, 0.0
      %1375 = vadd.xlane.f32.xlu0 %v1374
      %v1376 = vpop.xlane.xlu0 %1375
      %v1377 = vmul.f32 %v1376, %v1192
      %v1378 = vadd.f32 %v1377, 1e-12
      %v1379 = vrsqrt.pop %v1378
      %v1380 = vmul.f32 %v1372, %v1379
      %v1381 = vlaneseq
      %v1382 = vshrl.u32 %v1381, 7
      %v1383 = vsub.s32 0, %v1382
      %v1384 = vrot.slane %v466, %v1383
      %v1385 = vmul.f32 %v1380, %v1384
      %v1386 = vlaneseq
      %v1387 = vshrl.u32 %v1386, 7
      %v1388 = vsub.s32 0, %v1387
      %v1389 = vrot.slane %v467, %v1388
      %v1390 = vadd.f32 %v1385, %v1389
      %1391 = vst.msk [vmem:[#allocation2] sm:$0xff] %vm489, %v1390
      %s1392 = scalar_lea.vmem %s423, %s24
      %vm1393 = vcmask 253952
      %1394 = vst.msk [vmem:[%s1392] sm:$0x1] %vm1393, %v1390
      %p1395 = scmp.lt.s32.totalorder %s23, 1
      %s1396 = scalar_select %p1395, %s23, 1
      %s1397 = smul.addr %s1396, 2
      %s1398 = scalar_lea.vmem %s8, %s1397
      // Predicated region
      $region57: #{bert_layers_wise.1} parent=51 // pred_check
        %p1399 = pneg %p252
      $region58: #{bert_layers_wise.1} parent=51 // pred_check_branch
        %1401 = sbr.rel (%p1399) target = $region60
      $region59: #{bert_layers_wise.1} parent=51 // pred_region
        _
      $region60: #{bert_layers_wise.1} parent=51 // pred_fallthru
        _
    $region52: #{bert_layers_wise.1} parent=5 // pred_fallthru
      _
    %p1402 = scmp.le.s32.totalorder 2, %s14
    // Predicated region
    $region61: #{bert_layers_wise.1} parent=5 // pred_check
      %p1403 = pneg %p1402
    $region62: #{bert_layers_wise.1} parent=5 // pred_check_branch
      %1405 = sbr.rel (%p1403) target = $region64
    $region63: #{bert_layers_wise.1} parent=5 // pred_region
      %s1406 = ssub.s32 %s14, 2
      // Predicated region
      $region65: #{bert_layers_wise.1} parent=63 // pred_check
        %p1407 = pneg %p258
      $region66: #{bert_layers_wise.1} parent=63 // pred_check_branch
        %1409 = sbr.rel (%p1407) target = $region68
      $region67: #{bert_layers_wise.1} parent=63 // pred_region
        %p1410 = scmp.lt.s32.totalorder %s25, 1
        %s1411 = scalar_select %p1410, %s25, 1
        %s1412 = smul.addr %s1411, 2
        %s1413 = scalar_lea.vmem %s8, %s1412
      $region68: #{bert_layers_wise.1} parent=63 // pred_fallthru
        _
    $region64: #{bert_layers_wise.1} parent=5 // pred_fallthru
      _
  $region6: #{bert_layers_wise.1} parent=0 // loop_footer
    %s18 = sadd.s32 1, %s14
  $region7: #{bert_layers_wise.1} parent=0 // loop_footer_branch
    %13 = sbr.rel target = $region3
  $region8: #{bert_layers_wise.1} parent=0 // loop_exit
    _

</llo_original>
